<compile_context>
chip_gen: v6e
topology: v6e:2x2x1
jax: 0.10.0
libtpu: 0.0.40
codegen_flags: <defaults>
</compile_context>

<pallas_src>
import numpy as np
import jax
import jax.numpy as jnp
from jax.experimental import pallas as pl
from jax.experimental.pallas import tpu as pltpu

EPS = 1e-5  # nn.GroupNorm default eps


# ---------------------------------------------------------------------------
# Fused Pallas kernel
# ---------------------------------------------------------------------------

def _gn_relu(y, g, b):
    # GroupNorm(num_groups == num_channels) on (N points, C channels): per-channel
    # statistics over N, single-pass mean / mean-of-squares.
    mu = jnp.mean(y, axis=0, keepdims=True)
    ms = jnp.mean(y * y, axis=0, keepdims=True)
    var = jnp.maximum(ms - mu * mu, 0.0)
    yhat = (y - mu) * jax.lax.rsqrt(var + EPS)
    return jnp.maximum(yhat * g + b, 0.0)


def _fused_pointnet_kernel(
    x_ref,                      # (1, N, Cin)
    wf1_ref, g1_ref, b1_ref,    # fused T1 @ W1: (Cin, C1); GN gamma/beta (1, C1)
    t2_ref,                     # (C1, C1) constant STN2 transform
    w2_ref, g2_ref, b2_ref,     # (C1, C1)
    w3_ref, g3_ref, b3_ref,     # (C1, C1)
    w4_ref, g4_ref, b4_ref,     # (C1, C4)
    w5_ref, g5_ref, b5_ref,     # (C4, C5)
    avg_ref,                    # (S, N) per-segment averaging rows
    ind_ref,                    # (N, S) segment indicator
    cout0_ref,                  # (1, N, C1) out: activation after bmm with trans2
    feats_ref,                  # (1, N, C5) out: segment-averaged conv5 features
):
    f32 = jnp.float32
    x = x_ref[0]                                                      # (N, Cin)

    # conv1 (bmm with trans1 folded into the weight) + GN + ReLU
    h1 = _gn_relu(jnp.dot(x, wf1_ref[...], preferred_element_type=f32),
                  g1_ref[...], b1_ref[...])
    # bmm with trans2 -> first module output
    c0 = jnp.dot(h1, t2_ref[...], preferred_element_type=f32)
    cout0_ref[0] = c0
    # conv2..conv5 (+ GN + ReLU), all VMEM-resident
    h2 = _gn_relu(jnp.dot(c0, w2_ref[...], preferred_element_type=f32),
                  g2_ref[...], b2_ref[...])
    h3 = _gn_relu(jnp.dot(h2, w3_ref[...], preferred_element_type=f32),
                  g3_ref[...], b3_ref[...])
    h4 = _gn_relu(jnp.dot(h3, w4_ref[...], preferred_element_type=f32),
                  g4_ref[...], b4_ref[...])
    h5 = _gn_relu(jnp.dot(h4, w5_ref[...], preferred_element_type=f32),
                  g5_ref[...], b5_ref[...])
    # AdaptiveAvgPool1d(1) per point_split segment, broadcast back to segment width,
    # expressed as two thin matmuls:  ind @ (avg @ h5).
    seg_mean = jnp.dot(avg_ref[...], h5, preferred_element_type=f32)  # (S, C5)
    feats_ref[0] = jnp.dot(ind_ref[...], seg_mean, preferred_element_type=f32)


def fused_pointnet(x_bnc, wf1, g1, b1, t2, w2, g2, b2, w3, g3, b3,
                   w4, g4, b4, w5, g5, b5, avg_mat, indicator):
    B, N, Cin = x_bnc.shape
    C1 = wf1.shape[1]
    C5 = w5.shape[1]

    def w2d(a):  # full-extent 2-D parameter block, replicated over the batch grid
        return pl.BlockSpec(a.shape, lambda i: (0, 0))

    return pl.pallas_call(
        _fused_pointnet_kernel,
        out_shape=(jax.ShapeDtypeStruct((B, N, C1), jnp.float32),
                   jax.ShapeDtypeStruct((B, N, C5), jnp.float32)),
        grid=(B,),
        in_specs=[
            pl.BlockSpec((1, N, Cin), lambda i: (i, 0, 0)),
            w2d(wf1), w2d(g1), w2d(b1),
            w2d(t2),
            w2d(w2), w2d(g2), w2d(b2),
            w2d(w3), w2d(g3), w2d(b3),
            w2d(w4), w2d(g4), w2d(b4),
            w2d(w5), w2d(g5), w2d(b5),
            w2d(avg_mat), w2d(indicator),
        ],
        out_specs=(pl.BlockSpec((1, N, C1), lambda i: (i, 0, 0)),
                   pl.BlockSpec((1, N, C5), lambda i: (i, 0, 0))),
        compiler_params=pltpu.CompilerParams(dimension_semantics=("parallel",)),
    )(x_bnc, wf1, g1, b1, t2, w2, g2, b2, w3, g3, b3, w4, g4, b4,
      w5, g5, b5, avg_mat, indicator)


# ---------------------------------------------------------------------------
# Deterministic parameter init (synthetic; weights stored pre-transposed (Cin, Cout))
# ---------------------------------------------------------------------------

def init_conv_gn(key, cin, cout):
    k = jax.random.split(key, 4)
    return dict(
        w=0.1 * jax.random.normal(k[0], (cin, cout), jnp.float32),
        b=0.05 * jax.random.normal(k[1], (1, cout), jnp.float32),
        g=1.0 + 0.1 * jax.random.normal(k[2], (1, cout), jnp.float32),
        beta=0.05 * jax.random.normal(k[3], (1, cout), jnp.float32),
    )


def init_linear(key, cin, cout, zero=False):
    if zero:  # STN3d.output: nn.init.constant_(weight, 0) / constant_(bias, 0)
        return dict(w=jnp.zeros((cin, cout), jnp.float32), b=jnp.zeros((1, cout), jnp.float32))
    k = jax.random.split(key, 2)
    return dict(
        w=0.1 * jax.random.normal(k[0], (cin, cout), jnp.float32),
        b=0.05 * jax.random.normal(k[1], (1, cout), jnp.float32),
    )


def init_stn(key, in_channels, out_size, feature_channels, zero_output=True):
    r = 512 // feature_channels
    ks = jax.random.split(key, 6)
    return dict(
        conv1=init_conv_gn(ks[0], in_channels, 64 // r),
        conv2=init_conv_gn(ks[1], 64 // r, 128 // r),
        conv3=init_conv_gn(ks[2], 128 // r, 1024 // r),
        fc1=init_conv_gn(ks[3], 1024 // r, 512 // r),
        fc2=init_conv_gn(ks[4], 512 // r, 256 // r),
        output=init_linear(ks[5], 256 // r, out_size * out_size, zero=zero_output),
        out_size=out_size,
    )


def init_pointnetfeat(key, in_channels=3, out_channels=512, zero_output=True):
    r = 512 // out_channels
    ks = jax.random.split(key, 7)
    return dict(
        stn1=init_stn(ks[0], in_channels, in_channels, out_channels, zero_output),
        conv1=init_conv_gn(ks[1], in_channels, 64 // r),
        conv2=init_conv_gn(ks[2], 64 // r, 64 // r),
        stn2=init_stn(ks[3], 64 // r, 64 // r, out_channels, zero_output),
        conv3=init_conv_gn(ks[4], 64 // r, 64 // r),
        conv4=init_conv_gn(ks[5], 64 // r, 128 // r),
        conv5=init_conv_gn(ks[6], 128 // r, 1024 // r),
        reduction=r,
    )


# ---------------------------------------------------------------------------
# Forward pass (glue around the fused kernel)
# ---------------------------------------------------------------------------

def stn_trans_const(p):
    """STN3d output as a batch-independent constant matrix.

    GroupNorm(groups == channels) on a 2-D (B, C) input has single-element groups, so the
    normalized value is exactly 0 and the GN output equals its bias.  Therefore the fc
    path output is relu(fc_bn2.bias) regardless of the input, and the STN conv/max/fc1
    compute is dead.  This mirrors the PyTorch graph exactly (constant-folded in JAX).
    """
    g2 = jnp.maximum(p["fc2"]["beta"], 0.0)                    # relu(fc_bn2 bias), (1, 256//r)
    t = jnp.dot(g2, p["output"]["w"]) + p["output"]["b"]       # (1, s*s)
    s = p["out_size"]
    return t.reshape(s, s) + jnp.eye(s, dtype=jnp.float32)


def _segment_matrices(point_split, n):
    # point_split is read host-side, mirroring the .item() loop in the PyTorch forward.
    ps = [int(v) for v in np.asarray(point_split)]
    assert ps[0] == 0 and ps[-1] == n and all(b > a for a, b in zip(ps, ps[1:]))
    s_count = len(ps) - 1
    avg = np.zeros((s_count, n), np.float32)
    ind = np.zeros((n, s_count), np.float32)
    for i in range(s_count):
        a, b = ps[i], ps[i + 1]
        avg[i, a:b] = 1.0 / float(b - a)
        ind[a:b, i] = 1.0
    return jnp.asarray(avg), jnp.asarray(ind)


def pointnetfeat_forward(x_bcn, point_split, params):
    """PointNetfeatGN.forward.  x_bcn: (B, C_in, N) PyTorch layout."""
    B, Cin, N = x_bcn.shape
    x = jnp.transpose(x_bcn, (0, 2, 1)).astype(jnp.float32)    # -> (B, N, Cin)

    t1 = stn_trans_const(params["stn1"])                       # (Cin, Cin)
    t2 = stn_trans_const(params["stn2"])                       # (C1, C1)

    # Fold bmm(x, trans1) into conv1:  (x @ T1) @ W1 == x @ (T1 @ W1).
    # Conv biases are omitted inside the kernel: GN mean-subtraction cancels them exactly.
    wf1 = jnp.dot(t1, params["conv1"]["w"])

    avg_mat, indicator = _segment_matrices(point_split, N)

    p = params
    conv_out0, feats = fused_pointnet(
        x, wf1, p["conv1"]["g"], p["conv1"]["beta"], t2,
        p["conv2"]["w"], p["conv2"]["g"], p["conv2"]["beta"],
        p["conv3"]["w"], p["conv3"]["g"], p["conv3"]["beta"],
        p["conv4"]["w"], p["conv4"]["g"], p["conv4"]["beta"],
        p["conv5"]["w"], p["conv5"]["g"], p["conv5"]["beta"],
        avg_mat, indicator)

    conv_out = (jnp.transpose(conv_out0, (0, 2, 1)),   # (B, 64//r, N)
                jnp.transpose(feats, (0, 2, 1)))       # (B, 1024//r, N)
    trans = (jnp.broadcast_to(t1, (B,) + t1.shape),
             jnp.broadcast_to(t2, (B,) + t2.shape))
    return conv_out, trans


# ---------------------------------------------------------------------------
# Pure-JAX reference (faithful layer-by-layer mirror of the PyTorch module)
# ---------------------------------------------------------------------------

def _ref_gn_relu_3d(y, g, b):      # y: (B, N, C); per-channel stats over N
    mu = jnp.mean(y, axis=1, keepdims=True)
    var = jnp.mean((y - mu) ** 2, axis=1, keepdims=True)
    return jnp.maximum((y - mu) / jnp.sqrt(var + EPS) * g + b, 0.0)


def _ref_gn_relu_2d(y, g, b):      # y: (B, C); single-element groups -> normalized == 0
    return jnp.maximum(jnp.zeros_like(y) * g + b, 0.0)


def _ref_stn(x, p):                # x: (B, N, Cin)
    h = _ref_gn_relu_3d(x @ p["conv1"]["w"] + p["conv1"]["b"], p["conv1"]["g"], p["conv1"]["beta"])
    h = _ref_gn_relu_3d(h @ p["conv2"]["w"] + p["conv2"]["b"], p["conv2"]["g"], p["conv2"]["beta"])
    h = _ref_gn_relu_3d(h @ p["conv3"]["w"] + p["conv3"]["b"], p["conv3"]["g"], p["conv3"]["beta"])
    g = jnp.max(h, axis=1)
    y = _ref_gn_relu_2d(g @ p["fc1"]["w"] + p["fc1"]["b"], p["fc1"]["g"], p["fc1"]["beta"])
    y = _ref_gn_relu_2d(y @ p["fc2"]["w"] + p["fc2"]["b"], p["fc2"]["g"], p["fc2"]["beta"])
    t = y @ p["output"]["w"] + p["output"]["b"]
    s = p["out_size"]
    return t.reshape(-1, s, s) + jnp.eye(s, dtype=jnp.float32)


def ref_forward(x_bcn, point_split, params):
    B, Cin, N = x_bcn.shape
    x = jnp.transpose(x_bcn, (0, 2, 1)).astype(jnp.float32)
    t1 = _ref_stn(x, params["stn1"])
    x = jnp.einsum("bnc,bcd->bnd", x, t1)
    pc = params["conv1"]
    x = _ref_gn_relu_3d(x @ pc["w"] + pc["b"], pc["g"], pc["beta"])
    t2 = _ref_stn(x, params["stn2"])
    x = jnp.einsum("bnc,bcd->bnd", x, t2)
    c0 = x
    for name in ("conv2", "conv3", "conv4", "conv5"):
        pc = params[name]
        x = _ref_gn_relu_3d(x @ pc["w"] + pc["b"], pc["g"], pc["beta"])
    ps = [int(v) for v in np.asarray(point_split)]
    feats = []
    for i in range(len(ps) - 1):
        a, b = ps[i], ps[i + 1]
        m = jnp.mean(x[:, a:b, :], axis=1, keepdims=True)
        feats.append(jnp.broadcast_to(m, (B, b - a, x.shape[-1])))
    feats = jnp.concatenate(feats, axis=1)
    return ((jnp.transpose(c0, (0, 2, 1)), jnp.transpose(feats, (0, 2, 1))), (t1, t2))


# ---------------------------------------------------------------------------

if __name__ == "__main__":
    key = jax.random.PRNGKey(0)
    kx, kp = jax.random.split(key)

    B, Cin, N = 2, 3, 16
    out_channels = 64                     # feature_channels; reduction = 512 // 64 = 8
    r = 512 // out_channels

    x = jax.random.normal(kx, (B, Cin, N), jnp.float32)
    point_split = np.array([0, 5, 11, 16], dtype=np.int32)

    # zero_output=True matches nn.init.constant_(output.weight/bias, 0);
    # zero_output=False additionally exercises the constant-folded STN tail / bmm folding.
    for zero_output in (True, False):
        params = init_pointnetfeat(kp, in_channels=Cin, out_channels=out_channels,
                                   zero_output=zero_output)

        conv_out, trans = pointnetfeat_forward(x, point_split, params)
        jax.block_until_ready((conv_out, trans))

        assert conv_out[0].shape == (B, 64 // r, N)
        assert conv_out[1].shape == (B, 1024 // r, N)
        assert trans[0].shape == (B, Cin, Cin)
        assert trans[1].shape == (B, 64 // r, 64 // r)
        assert all(jnp.isfinite(t).all() for t in list(conv_out) + list(trans))

        ref_conv, ref_trans = ref_forward(x, point_split, params)
        for got, want in list(zip(conv_out, ref_conv)) + list(zip(trans, ref_trans)):
            np.testing.assert_allclose(np.asarray(got), np.asarray(want),
                                       rtol=1e-4, atol=1e-4)

    print("KERNEL_OK")
</pallas_src>

<mosaic_0001>
module attributes {stable_mosaic.version = 11 : i64} {
  func.func @_fused_pointnet_kernel(%arg0: i32, %arg1: memref<1x16x3xf32, #tpu.memory_space<vmem>>, %arg2: memref<3x8xf32, #tpu.memory_space<vmem>>, %arg3: memref<1x8xf32, #tpu.memory_space<vmem>>, %arg4: memref<1x8xf32, #tpu.memory_space<vmem>>, %arg5: memref<8x8xf32, #tpu.memory_space<vmem>>, %arg6: memref<8x8xf32, #tpu.memory_space<vmem>>, %arg7: memref<1x8xf32, #tpu.memory_space<vmem>>, %arg8: memref<1x8xf32, #tpu.memory_space<vmem>>, %arg9: memref<8x8xf32, #tpu.memory_space<vmem>>, %arg10: memref<1x8xf32, #tpu.memory_space<vmem>>, %arg11: memref<1x8xf32, #tpu.memory_space<vmem>>, %arg12: memref<8x16xf32, #tpu.memory_space<vmem>>, %arg13: memref<1x16xf32, #tpu.memory_space<vmem>>, %arg14: memref<1x16xf32, #tpu.memory_space<vmem>>, %arg15: memref<16x128xf32, #tpu.memory_space<vmem>>, %arg16: memref<1x128xf32, #tpu.memory_space<vmem>>, %arg17: memref<1x128xf32, #tpu.memory_space<vmem>>, %arg18: memref<3x16xf32, #tpu.memory_space<vmem>>, %arg19: memref<16x3xf32, #tpu.memory_space<vmem>>, %arg20: memref<1x16x8xf32, #tpu.memory_space<vmem>>, %arg21: memref<1x16x128xf32, #tpu.memory_space<vmem>>) attributes {dimension_semantics = [#tpu.dimension_semantics<parallel>], iteration_bounds = array<i64: 2>, scalar_prefetch = 0 : i64, scratch_operands = 0 : i64, tpu.core_type = #tpu.core_type<tc>, window_params = [{transform_indices = @transform_0, window_bounds = array<i64: 1, 16, 3>}, {pipeline_mode = #tpu.pipeline_mode<synchronous>, transform_indices = @transform_1, window_bounds = array<i64: 3, 8>}, {pipeline_mode = #tpu.pipeline_mode<synchronous>, transform_indices = @transform_2, window_bounds = array<i64: 1, 8>}, {pipeline_mode = #tpu.pipeline_mode<synchronous>, transform_indices = @transform_3, window_bounds = array<i64: 1, 8>}, {pipeline_mode = #tpu.pipeline_mode<synchronous>, transform_indices = @transform_4, window_bounds = array<i64: 8, 8>}, {pipeline_mode = #tpu.pipeline_mode<synchronous>, transform_indices = @transform_5, window_bounds = array<i64: 8, 8>}, {pipeline_mode = #tpu.pipeline_mode<synchronous>, transform_indices = @transform_6, window_bounds = array<i64: 1, 8>}, {pipeline_mode = #tpu.pipeline_mode<synchronous>, transform_indices = @transform_7, window_bounds = array<i64: 1, 8>}, {pipeline_mode = #tpu.pipeline_mode<synchronous>, transform_indices = @transform_8, window_bounds = array<i64: 8, 8>}, {pipeline_mode = #tpu.pipeline_mode<synchronous>, transform_indices = @transform_9, window_bounds = array<i64: 1, 8>}, {pipeline_mode = #tpu.pipeline_mode<synchronous>, transform_indices = @transform_10, window_bounds = array<i64: 1, 8>}, {pipeline_mode = #tpu.pipeline_mode<synchronous>, transform_indices = @transform_11, window_bounds = array<i64: 8, 16>}, {pipeline_mode = #tpu.pipeline_mode<synchronous>, transform_indices = @transform_12, window_bounds = array<i64: 1, 16>}, {pipeline_mode = #tpu.pipeline_mode<synchronous>, transform_indices = @transform_13, window_bounds = array<i64: 1, 16>}, {pipeline_mode = #tpu.pipeline_mode<synchronous>, transform_indices = @transform_14, window_bounds = array<i64: 16, 128>}, {pipeline_mode = #tpu.pipeline_mode<synchronous>, transform_indices = @transform_15, window_bounds = array<i64: 1, 128>}, {pipeline_mode = #tpu.pipeline_mode<synchronous>, transform_indices = @transform_16, window_bounds = array<i64: 1, 128>}, {pipeline_mode = #tpu.pipeline_mode<synchronous>, transform_indices = @transform_17, window_bounds = array<i64: 3, 16>}, {pipeline_mode = #tpu.pipeline_mode<synchronous>, transform_indices = @transform_18, window_bounds = array<i64: 16, 3>}, {transform_indices = @transform_19, window_bounds = array<i64: 1, 16, 8>}, {transform_indices = @transform_20, window_bounds = array<i64: 1, 16, 128>}]} {
    %c0 = arith.constant 0 : index
    %c0_0 = arith.constant 0 : index
    %c0_1 = arith.constant 0 : index
    %0 = vector.load %arg1[%c0, %c0_0, %c0_1] : memref<1x16x3xf32, #tpu.memory_space<vmem>>, vector<1x16x3xf32>
    %1 = vector.shape_cast %0 : vector<1x16x3xf32> to vector<16x3xf32>
    %c0_2 = arith.constant 0 : index
    %c0_3 = arith.constant 0 : index
    %2 = vector.load %arg2[%c0_2, %c0_3] : memref<3x8xf32, #tpu.memory_space<vmem>>, vector<3x8xf32>
    %cst = arith.constant dense<0.000000e+00> : vector<16x8xf32>
    %3 = tpu.matmul %1, %2, %cst {dimension_numbers = #tpu.dot_dimension_numbers<[1], [0], [0], [1], [0, 0, 1, 1], [], []>} : vector<16x3xf32>, vector<3x8xf32>, vector<16x8xf32> -> vector<16x8xf32>
    %c0_4 = arith.constant 0 : index
    %c0_5 = arith.constant 0 : index
    %4 = vector.load %arg3[%c0_4, %c0_5] : memref<1x8xf32, #tpu.memory_space<vmem>>, vector<1x8xf32>
    %c0_6 = arith.constant 0 : index
    %c0_7 = arith.constant 0 : index
    %5 = vector.load %arg4[%c0_6, %c0_7] : memref<1x8xf32, #tpu.memory_space<vmem>>, vector<1x8xf32>
    %cst_8 = arith.constant dense<0.000000e+00> : vector<8xf32>
    %6 = vector.multi_reduction <add>, %3, %cst_8 [0] : vector<16x8xf32> to vector<8xf32>
    %7 = vector.shape_cast %6 : vector<8xf32> to vector<1x8xf32>
    %cst_9 = arith.constant 1.600000e+01 : f32
    %8 = vector.broadcast %cst_9 : f32 to vector<1x8xf32>
    %9 = arith.divf %7, %8 : vector<1x8xf32>
    %10 = arith.mulf %3, %3 : vector<16x8xf32>
    %cst_10 = arith.constant dense<0.000000e+00> : vector<8xf32>
    %11 = vector.multi_reduction <add>, %10, %cst_10 [0] : vector<16x8xf32> to vector<8xf32>
    %12 = vector.shape_cast %11 : vector<8xf32> to vector<1x8xf32>
    %cst_11 = arith.constant 1.600000e+01 : f32
    %13 = vector.broadcast %cst_11 : f32 to vector<1x8xf32>
    %14 = arith.divf %12, %13 : vector<1x8xf32>
    %15 = arith.mulf %9, %9 : vector<1x8xf32>
    %16 = arith.subf %14, %15 : vector<1x8xf32>
    %cst_12 = arith.constant 0.000000e+00 : f32
    %17 = vector.broadcast %cst_12 : f32 to vector<1x8xf32>
    %18 = arith.maximumf %16, %17 : vector<1x8xf32>
    %19 = vector.broadcast %9 : vector<1x8xf32> to vector<16x8xf32>
    %20 = arith.subf %3, %19 : vector<16x8xf32>
    %cst_13 = arith.constant 9.99999974E-6 : f32
    %21 = vector.broadcast %cst_13 : f32 to vector<1x8xf32>
    %22 = arith.addf %18, %21 : vector<1x8xf32>
    %23 = math.rsqrt %22 : vector<1x8xf32>
    %24 = vector.broadcast %23 : vector<1x8xf32> to vector<16x8xf32>
    %25 = arith.mulf %20, %24 : vector<16x8xf32>
    %26 = vector.broadcast %4 : vector<1x8xf32> to vector<16x8xf32>
    %27 = arith.mulf %25, %26 : vector<16x8xf32>
    %28 = vector.broadcast %5 : vector<1x8xf32> to vector<16x8xf32>
    %29 = arith.addf %27, %28 : vector<16x8xf32>
    %cst_14 = arith.constant 0.000000e+00 : f32
    %30 = vector.broadcast %cst_14 : f32 to vector<16x8xf32>
    %31 = arith.maximumf %29, %30 : vector<16x8xf32>
    %c0_15 = arith.constant 0 : index
    %c0_16 = arith.constant 0 : index
    %32 = vector.load %arg5[%c0_15, %c0_16] : memref<8x8xf32, #tpu.memory_space<vmem>>, vector<8x8xf32>
    %cst_17 = arith.constant dense<0.000000e+00> : vector<16x8xf32>
    %33 = tpu.matmul %31, %32, %cst_17 {dimension_numbers = #tpu.dot_dimension_numbers<[1], [0], [0], [1], [0, 0, 1, 1], [], []>} : vector<16x8xf32>, vector<8x8xf32>, vector<16x8xf32> -> vector<16x8xf32>
    %c0_18 = arith.constant 0 : index
    %c0_19 = arith.constant 0 : index
    %c0_20 = arith.constant 0 : index
    %34 = vector.load %arg20[%c0_18, %c0_19, %c0_20] : memref<1x16x8xf32, #tpu.memory_space<vmem>>, vector<1x16x8xf32>
    %35 = vector.shape_cast %34 : vector<1x16x8xf32> to vector<16x8xf32>
    %36 = vector.shape_cast %33 : vector<16x8xf32> to vector<1x16x8xf32>
    tpu.vector_store %arg20[%c0_18, %c0_19, %c0_20], %36 {strides = array<i32>} : memref<1x16x8xf32, #tpu.memory_space<vmem>>, vector<1x16x8xf32>,
    %c0_21 = arith.constant 0 : index
    %c0_22 = arith.constant 0 : index
    %37 = vector.load %arg6[%c0_21, %c0_22] : memref<8x8xf32, #tpu.memory_space<vmem>>, vector<8x8xf32>
    %cst_23 = arith.constant dense<0.000000e+00> : vector<16x8xf32>
    %38 = tpu.matmul %33, %37, %cst_23 {dimension_numbers = #tpu.dot_dimension_numbers<[1], [0], [0], [1], [0, 0, 1, 1], [], []>} : vector<16x8xf32>, vector<8x8xf32>, vector<16x8xf32> -> vector<16x8xf32>
    %c0_24 = arith.constant 0 : index
    %c0_25 = arith.constant 0 : index
    %39 = vector.load %arg7[%c0_24, %c0_25] : memref<1x8xf32, #tpu.memory_space<vmem>>, vector<1x8xf32>
    %c0_26 = arith.constant 0 : index
    %c0_27 = arith.constant 0 : index
    %40 = vector.load %arg8[%c0_26, %c0_27] : memref<1x8xf32, #tpu.memory_space<vmem>>, vector<1x8xf32>
    %cst_28 = arith.constant dense<0.000000e+00> : vector<8xf32>
    %41 = vector.multi_reduction <add>, %38, %cst_28 [0] : vector<16x8xf32> to vector<8xf32>
    %42 = vector.shape_cast %41 : vector<8xf32> to vector<1x8xf32>
    %cst_29 = arith.constant 1.600000e+01 : f32
    %43 = vector.broadcast %cst_29 : f32 to vector<1x8xf32>
    %44 = arith.divf %42, %43 : vector<1x8xf32>
    %45 = arith.mulf %38, %38 : vector<16x8xf32>
    %cst_30 = arith.constant dense<0.000000e+00> : vector<8xf32>
    %46 = vector.multi_reduction <add>, %45, %cst_30 [0] : vector<16x8xf32> to vector<8xf32>
    %47 = vector.shape_cast %46 : vector<8xf32> to vector<1x8xf32>
    %cst_31 = arith.constant 1.600000e+01 : f32
    %48 = vector.broadcast %cst_31 : f32 to vector<1x8xf32>
    %49 = arith.divf %47, %48 : vector<1x8xf32>
    %50 = arith.mulf %44, %44 : vector<1x8xf32>
    %51 = arith.subf %49, %50 : vector<1x8xf32>
    %cst_32 = arith.constant 0.000000e+00 : f32
    %52 = vector.broadcast %cst_32 : f32 to vector<1x8xf32>
    %53 = arith.maximumf %51, %52 : vector<1x8xf32>
    %54 = vector.broadcast %44 : vector<1x8xf32> to vector<16x8xf32>
    %55 = arith.subf %38, %54 : vector<16x8xf32>
    %cst_33 = arith.constant 9.99999974E-6 : f32
    %56 = vector.broadcast %cst_33 : f32 to vector<1x8xf32>
    %57 = arith.addf %53, %56 : vector<1x8xf32>
    %58 = math.rsqrt %57 : vector<1x8xf32>
    %59 = vector.broadcast %58 : vector<1x8xf32> to vector<16x8xf32>
    %60 = arith.mulf %55, %59 : vector<16x8xf32>
    %61 = vector.broadcast %39 : vector<1x8xf32> to vector<16x8xf32>
    %62 = arith.mulf %60, %61 : vector<16x8xf32>
    %63 = vector.broadcast %40 : vector<1x8xf32> to vector<16x8xf32>
    %64 = arith.addf %62, %63 : vector<16x8xf32>
    %cst_34 = arith.constant 0.000000e+00 : f32
    %65 = vector.broadcast %cst_34 : f32 to vector<16x8xf32>
    %66 = arith.maximumf %64, %65 : vector<16x8xf32>
    %c0_35 = arith.constant 0 : index
    %c0_36 = arith.constant 0 : index
    %67 = vector.load %arg9[%c0_35, %c0_36] : memref<8x8xf32, #tpu.memory_space<vmem>>, vector<8x8xf32>
    %cst_37 = arith.constant dense<0.000000e+00> : vector<16x8xf32>
    %68 = tpu.matmul %66, %67, %cst_37 {dimension_numbers = #tpu.dot_dimension_numbers<[1], [0], [0], [1], [0, 0, 1, 1], [], []>} : vector<16x8xf32>, vector<8x8xf32>, vector<16x8xf32> -> vector<16x8xf32>
    %c0_38 = arith.constant 0 : index
    %c0_39 = arith.constant 0 : index
    %69 = vector.load %arg10[%c0_38, %c0_39] : memref<1x8xf32, #tpu.memory_space<vmem>>, vector<1x8xf32>
    %c0_40 = arith.constant 0 : index
    %c0_41 = arith.constant 0 : index
    %70 = vector.load %arg11[%c0_40, %c0_41] : memref<1x8xf32, #tpu.memory_space<vmem>>, vector<1x8xf32>
    %cst_42 = arith.constant dense<0.000000e+00> : vector<8xf32>
    %71 = vector.multi_reduction <add>, %68, %cst_42 [0] : vector<16x8xf32> to vector<8xf32>
    %72 = vector.shape_cast %71 : vector<8xf32> to vector<1x8xf32>
    %cst_43 = arith.constant 1.600000e+01 : f32
    %73 = vector.broadcast %cst_43 : f32 to vector<1x8xf32>
    %74 = arith.divf %72, %73 : vector<1x8xf32>
    %75 = arith.mulf %68, %68 : vector<16x8xf32>
    %cst_44 = arith.constant dense<0.000000e+00> : vector<8xf32>
    %76 = vector.multi_reduction <add>, %75, %cst_44 [0] : vector<16x8xf32> to vector<8xf32>
    %77 = vector.shape_cast %76 : vector<8xf32> to vector<1x8xf32>
    %cst_45 = arith.constant 1.600000e+01 : f32
    %78 = vector.broadcast %cst_45 : f32 to vector<1x8xf32>
    %79 = arith.divf %77, %78 : vector<1x8xf32>
    %80 = arith.mulf %74, %74 : vector<1x8xf32>
    %81 = arith.subf %79, %80 : vector<1x8xf32>
    %cst_46 = arith.constant 0.000000e+00 : f32
    %82 = vector.broadcast %cst_46 : f32 to vector<1x8xf32>
    %83 = arith.maximumf %81, %82 : vector<1x8xf32>
    %84 = vector.broadcast %74 : vector<1x8xf32> to vector<16x8xf32>
    %85 = arith.subf %68, %84 : vector<16x8xf32>
    %cst_47 = arith.constant 9.99999974E-6 : f32
    %86 = vector.broadcast %cst_47 : f32 to vector<1x8xf32>
    %87 = arith.addf %83, %86 : vector<1x8xf32>
    %88 = math.rsqrt %87 : vector<1x8xf32>
    %89 = vector.broadcast %88 : vector<1x8xf32> to vector<16x8xf32>
    %90 = arith.mulf %85, %89 : vector<16x8xf32>
    %91 = vector.broadcast %69 : vector<1x8xf32> to vector<16x8xf32>
    %92 = arith.mulf %90, %91 : vector<16x8xf32>
    %93 = vector.broadcast %70 : vector<1x8xf32> to vector<16x8xf32>
    %94 = arith.addf %92, %93 : vector<16x8xf32>
    %cst_48 = arith.constant 0.000000e+00 : f32
    %95 = vector.broadcast %cst_48 : f32 to vector<16x8xf32>
    %96 = arith.maximumf %94, %95 : vector<16x8xf32>
    %c0_49 = arith.constant 0 : index
    %c0_50 = arith.constant 0 : index
    %97 = vector.load %arg12[%c0_49, %c0_50] : memref<8x16xf32, #tpu.memory_space<vmem>>, vector<8x16xf32>
    %cst_51 = arith.constant dense<0.000000e+00> : vector<16x16xf32>
    %98 = tpu.matmul %96, %97, %cst_51 {dimension_numbers = #tpu.dot_dimension_numbers<[1], [0], [0], [1], [0, 0, 1, 1], [], []>} : vector<16x8xf32>, vector<8x16xf32>, vector<16x16xf32> -> vector<16x16xf32>
    %c0_52 = arith.constant 0 : index
    %c0_53 = arith.constant 0 : index
    %99 = vector.load %arg13[%c0_52, %c0_53] : memref<1x16xf32, #tpu.memory_space<vmem>>, vector<1x16xf32>
    %c0_54 = arith.constant 0 : index
    %c0_55 = arith.constant 0 : index
    %100 = vector.load %arg14[%c0_54, %c0_55] : memref<1x16xf32, #tpu.memory_space<vmem>>, vector<1x16xf32>
    %cst_56 = arith.constant dense<0.000000e+00> : vector<16xf32>
    %101 = vector.multi_reduction <add>, %98, %cst_56 [0] : vector<16x16xf32> to vector<16xf32>
    %102 = vector.shape_cast %101 : vector<16xf32> to vector<1x16xf32>
    %cst_57 = arith.constant 1.600000e+01 : f32
    %103 = vector.broadcast %cst_57 : f32 to vector<1x16xf32>
    %104 = arith.divf %102, %103 : vector<1x16xf32>
    %105 = arith.mulf %98, %98 : vector<16x16xf32>
    %cst_58 = arith.constant dense<0.000000e+00> : vector<16xf32>
    %106 = vector.multi_reduction <add>, %105, %cst_58 [0] : vector<16x16xf32> to vector<16xf32>
    %107 = vector.shape_cast %106 : vector<16xf32> to vector<1x16xf32>
    %cst_59 = arith.constant 1.600000e+01 : f32
    %108 = vector.broadcast %cst_59 : f32 to vector<1x16xf32>
    %109 = arith.divf %107, %108 : vector<1x16xf32>
    %110 = arith.mulf %104, %104 : vector<1x16xf32>
    %111 = arith.subf %109, %110 : vector<1x16xf32>
    %cst_60 = arith.constant 0.000000e+00 : f32
    %112 = vector.broadcast %cst_60 : f32 to vector<1x16xf32>
    %113 = arith.maximumf %111, %112 : vector<1x16xf32>
    %114 = vector.broadcast %104 : vector<1x16xf32> to vector<16x16xf32>
    %115 = arith.subf %98, %114 : vector<16x16xf32>
    %cst_61 = arith.constant 9.99999974E-6 : f32
    %116 = vector.broadcast %cst_61 : f32 to vector<1x16xf32>
    %117 = arith.addf %113, %116 : vector<1x16xf32>
    %118 = math.rsqrt %117 : vector<1x16xf32>
    %119 = vector.broadcast %118 : vector<1x16xf32> to vector<16x16xf32>
    %120 = arith.mulf %115, %119 : vector<16x16xf32>
    %121 = vector.broadcast %99 : vector<1x16xf32> to vector<16x16xf32>
    %122 = arith.mulf %120, %121 : vector<16x16xf32>
    %123 = vector.broadcast %100 : vector<1x16xf32> to vector<16x16xf32>
    %124 = arith.addf %122, %123 : vector<16x16xf32>
    %cst_62 = arith.constant 0.000000e+00 : f32
    %125 = vector.broadcast %cst_62 : f32 to vector<16x16xf32>
    %126 = arith.maximumf %124, %125 : vector<16x16xf32>
    %c0_63 = arith.constant 0 : index
    %c0_64 = arith.constant 0 : index
    %127 = vector.load %arg15[%c0_63, %c0_64] : memref<16x128xf32, #tpu.memory_space<vmem>>, vector<16x128xf32>
    %cst_65 = arith.constant dense<0.000000e+00> : vector<16x128xf32>
    %128 = tpu.matmul %126, %127, %cst_65 {dimension_numbers = #tpu.dot_dimension_numbers<[1], [0], [0], [1], [0, 0, 1, 1], [], []>} : vector<16x16xf32>, vector<16x128xf32>, vector<16x128xf32> -> vector<16x128xf32>
    %c0_66 = arith.constant 0 : index
    %c0_67 = arith.constant 0 : index
    %129 = vector.load %arg16[%c0_66, %c0_67] : memref<1x128xf32, #tpu.memory_space<vmem>>, vector<1x128xf32>
    %c0_68 = arith.constant 0 : index
    %c0_69 = arith.constant 0 : index
    %130 = vector.load %arg17[%c0_68, %c0_69] : memref<1x128xf32, #tpu.memory_space<vmem>>, vector<1x128xf32>
    %cst_70 = arith.constant dense<0.000000e+00> : vector<128xf32>
    %131 = vector.multi_reduction <add>, %128, %cst_70 [0] : vector<16x128xf32> to vector<128xf32>
    %132 = vector.shape_cast %131 : vector<128xf32> to vector<1x128xf32>
    %cst_71 = arith.constant 1.600000e+01 : f32
    %133 = vector.broadcast %cst_71 : f32 to vector<1x128xf32>
    %134 = arith.divf %132, %133 : vector<1x128xf32>
    %135 = arith.mulf %128, %128 : vector<16x128xf32>
    %cst_72 = arith.constant dense<0.000000e+00> : vector<128xf32>
    %136 = vector.multi_reduction <add>, %135, %cst_72 [0] : vector<16x128xf32> to vector<128xf32>
    %137 = vector.shape_cast %136 : vector<128xf32> to vector<1x128xf32>
    %cst_73 = arith.constant 1.600000e+01 : f32
    %138 = vector.broadcast %cst_73 : f32 to vector<1x128xf32>
    %139 = arith.divf %137, %138 : vector<1x128xf32>
    %140 = arith.mulf %134, %134 : vector<1x128xf32>
    %141 = arith.subf %139, %140 : vector<1x128xf32>
    %cst_74 = arith.constant 0.000000e+00 : f32
    %142 = vector.broadcast %cst_74 : f32 to vector<1x128xf32>
    %143 = arith.maximumf %141, %142 : vector<1x128xf32>
    %144 = vector.broadcast %134 : vector<1x128xf32> to vector<16x128xf32>
    %145 = arith.subf %128, %144 : vector<16x128xf32>
    %cst_75 = arith.constant 9.99999974E-6 : f32
    %146 = vector.broadcast %cst_75 : f32 to vector<1x128xf32>
    %147 = arith.addf %143, %146 : vector<1x128xf32>
    %148 = math.rsqrt %147 : vector<1x128xf32>
    %149 = vector.broadcast %148 : vector<1x128xf32> to vector<16x128xf32>
    %150 = arith.mulf %145, %149 : vector<16x128xf32>
    %151 = vector.broadcast %129 : vector<1x128xf32> to vector<16x128xf32>
    %152 = arith.mulf %150, %151 : vector<16x128xf32>
    %153 = vector.broadcast %130 : vector<1x128xf32> to vector<16x128xf32>
    %154 = arith.addf %152, %153 : vector<16x128xf32>
    %cst_76 = arith.constant 0.000000e+00 : f32
    %155 = vector.broadcast %cst_76 : f32 to vector<16x128xf32>
    %156 = arith.maximumf %154, %155 : vector<16x128xf32>
    %c0_77 = arith.constant 0 : index
    %c0_78 = arith.constant 0 : index
    %157 = vector.load %arg18[%c0_77, %c0_78] : memref<3x16xf32, #tpu.memory_space<vmem>>, vector<3x16xf32>
    %cst_79 = arith.constant dense<0.000000e+00> : vector<3x128xf32>
    %158 = tpu.matmul %157, %156, %cst_79 {dimension_numbers = #tpu.dot_dimension_numbers<[1], [0], [0], [1], [0, 0, 1, 1], [], []>} : vector<3x16xf32>, vector<16x128xf32>, vector<3x128xf32> -> vector<3x128xf32>
    %c0_80 = arith.constant 0 : index
    %c0_81 = arith.constant 0 : index
    %159 = vector.load %arg19[%c0_80, %c0_81] : memref<16x3xf32, #tpu.memory_space<vmem>>, vector<16x3xf32>
    %cst_82 = arith.constant dense<0.000000e+00> : vector<16x128xf32>
    %160 = tpu.matmul %159, %158, %cst_82 {dimension_numbers = #tpu.dot_dimension_numbers<[1], [0], [0], [1], [0, 0, 1, 1], [], []>} : vector<16x3xf32>, vector<3x128xf32>, vector<16x128xf32> -> vector<16x128xf32>
    %c0_83 = arith.constant 0 : index
    %c0_84 = arith.constant 0 : index
    %c0_85 = arith.constant 0 : index
    %161 = vector.load %arg21[%c0_83, %c0_84, %c0_85] : memref<1x16x128xf32, #tpu.memory_space<vmem>>, vector<1x16x128xf32>
    %162 = vector.shape_cast %161 : vector<1x16x128xf32> to vector<16x128xf32>
    %163 = vector.shape_cast %160 : vector<16x128xf32> to vector<1x16x128xf32>
    tpu.vector_store %arg21[%c0_83, %c0_84, %c0_85], %163 {strides = array<i32>} : memref<1x16x128xf32, #tpu.memory_space<vmem>>, vector<1x16x128xf32>,
    return
  }
  func.func @transform_0(%arg0: i32) -> (i32, i32, i32) {
    %c0_i32 = arith.constant 0 : i32
    %c0_i32_0 = arith.constant 0 : i32
    %c0_i32_1 = arith.constant 0 : i32
    return %arg0, %c0_i32, %c0_i32_0 : i32, i32, i32
  }
  func.func @transform_1(%arg0: i32) -> (i32, i32) {
    %c0_i32 = arith.constant 0 : i32
    %c0_i32_0 = arith.constant 0 : i32
    %c0_i32_1 = arith.constant 0 : i32
    return %c0_i32, %c0_i32_0 : i32, i32
  }
  func.func @transform_2(%arg0: i32) -> (i32, i32) {
    %c0_i32 = arith.constant 0 : i32
    %c0_i32_0 = arith.constant 0 : i32
    %c0_i32_1 = arith.constant 0 : i32
    return %c0_i32, %c0_i32_0 : i32, i32
  }
  func.func @transform_3(%arg0: i32) -> (i32, i32) {
    %c0_i32 = arith.constant 0 : i32
    %c0_i32_0 = arith.constant 0 : i32
    %c0_i32_1 = arith.constant 0 : i32
    return %c0_i32, %c0_i32_0 : i32, i32
  }
  func.func @transform_4(%arg0: i32) -> (i32, i32) {
    %c0_i32 = arith.constant 0 : i32
    %c0_i32_0 = arith.constant 0 : i32
    %c0_i32_1 = arith.constant 0 : i32
    return %c0_i32, %c0_i32_0 : i32, i32
  }
  func.func @transform_5(%arg0: i32) -> (i32, i32) {
    %c0_i32 = arith.constant 0 : i32
    %c0_i32_0 = arith.constant 0 : i32
    %c0_i32_1 = arith.constant 0 : i32
    return %c0_i32, %c0_i32_0 : i32, i32
  }
  func.func @transform_6(%arg0: i32) -> (i32, i32) {
    %c0_i32 = arith.constant 0 : i32
    %c0_i32_0 = arith.constant 0 : i32
    %c0_i32_1 = arith.constant 0 : i32
    return %c0_i32, %c0_i32_0 : i32, i32
  }
  func.func @transform_7(%arg0: i32) -> (i32, i32) {
    %c0_i32 = arith.constant 0 : i32
    %c0_i32_0 = arith.constant 0 : i32
    %c0_i32_1 = arith.constant 0 : i32
    return %c0_i32, %c0_i32_0 : i32, i32
  }
  func.func @transform_8(%arg0: i32) -> (i32, i32) {
    %c0_i32 = arith.constant 0 : i32
    %c0_i32_0 = arith.constant 0 : i32
    %c0_i32_1 = arith.constant 0 : i32
    return %c0_i32, %c0_i32_0 : i32, i32
  }
  func.func @transform_9(%arg0: i32) -> (i32, i32) {
    %c0_i32 = arith.constant 0 : i32
    %c0_i32_0 = arith.constant 0 : i32
    %c0_i32_1 = arith.constant 0 : i32
    return %c0_i32, %c0_i32_0 : i32, i32
  }
  func.func @transform_10(%arg0: i32) -> (i32, i32) {
    %c0_i32 = arith.constant 0 : i32
    %c0_i32_0 = arith.constant 0 : i32
    %c0_i32_1 = arith.constant 0 : i32
    return %c0_i32, %c0_i32_0 : i32, i32
  }
  func.func @transform_11(%arg0: i32) -> (i32, i32) {
    %c0_i32 = arith.constant 0 : i32
    %c0_i32_0 = arith.constant 0 : i32
    %c0_i32_1 = arith.constant 0 : i32
    return %c0_i32, %c0_i32_0 : i32, i32
  }
  func.func @transform_12(%arg0: i32) -> (i32, i32) {
    %c0_i32 = arith.constant 0 : i32
    %c0_i32_0 = arith.constant 0 : i32
    %c0_i32_1 = arith.constant 0 : i32
    return %c0_i32, %c0_i32_0 : i32, i32
  }
  func.func @transform_13(%arg0: i32) -> (i32, i32) {
    %c0_i32 = arith.constant 0 : i32
    %c0_i32_0 = arith.constant 0 : i32
    %c0_i32_1 = arith.constant 0 : i32
    return %c0_i32, %c0_i32_0 : i32, i32
  }
  func.func @transform_14(%arg0: i32) -> (i32, i32) {
    %c0_i32 = arith.constant 0 : i32
    %c0_i32_0 = arith.constant 0 : i32
    %c0_i32_1 = arith.constant 0 : i32
    return %c0_i32, %c0_i32_0 : i32, i32
  }
  func.func @transform_15(%arg0: i32) -> (i32, i32) {
    %c0_i32 = arith.constant 0 : i32
    %c0_i32_0 = arith.constant 0 : i32
    %c0_i32_1 = arith.constant 0 : i32
    return %c0_i32, %c0_i32_0 : i32, i32
  }
  func.func @transform_16(%arg0: i32) -> (i32, i32) {
    %c0_i32 = arith.constant 0 : i32
    %c0_i32_0 = arith.constant 0 : i32
    %c0_i32_1 = arith.constant 0 : i32
    return %c0_i32, %c0_i32_0 : i32, i32
  }
  func.func @transform_17(%arg0: i32) -> (i32, i32) {
    %c0_i32 = arith.constant 0 : i32
    %c0_i32_0 = arith.constant 0 : i32
    %c0_i32_1 = arith.constant 0 : i32
    return %c0_i32, %c0_i32_0 : i32, i32
  }
  func.func @transform_18(%arg0: i32) -> (i32, i32) {
    %c0_i32 = arith.constant 0 : i32
    %c0_i32_0 = arith.constant 0 : i32
    %c0_i32_1 = arith.constant 0 : i32
    return %c0_i32, %c0_i32_0 : i32, i32
  }
  func.func @transform_19(%arg0: i32) -> (i32, i32, i32) {
    %c0_i32 = arith.constant 0 : i32
    %c0_i32_0 = arith.constant 0 : i32
    %c0_i32_1 = arith.constant 0 : i32
    return %arg0, %c0_i32, %c0_i32_0 : i32, i32, i32
  }
  func.func @transform_20(%arg0: i32) -> (i32, i32, i32) {
    %c0_i32 = arith.constant 0 : i32
    %c0_i32_0 = arith.constant 0 : i32
    %c0_i32_1 = arith.constant 0 : i32
    return %arg0, %c0_i32, %c0_i32_0 : i32, i32, i32
  }
}

</mosaic_0001>

<llo_original>
// kernel: tpu_custom_call.1
$region0: #{tpu_custom_call.1}
  #allocation0 [shape = 'u32[]', space=smem, size = 0x4, offset = 0x4, fixed_abs, tag = 'smem constant byte address 0x4 - core index']
  #allocation1 [shape = 'u32[144,128]{1,0:T(1,128)}', space=vmem, size = 0x12000, scoped, tag = 'internal scratch']
  %s0 = inlined_call_operand.vmem [shape: f32[2,16,3], index: 0, kind: input, shape index: {}]
  %s1 = inlined_call_operand.vmem [shape: f32[3,8], index: 1, kind: input, shape index: {}]
  %s2 = inlined_call_operand.vmem [shape: f32[1,8], index: 2, kind: input, shape index: {}]
  %s3 = inlined_call_operand.vmem [shape: f32[1,8], index: 3, kind: input, shape index: {}]
  %s4 = inlined_call_operand.vmem [shape: f32[8,8], index: 4, kind: input, shape index: {}]
  %s5 = inlined_call_operand.vmem [shape: f32[8,8], index: 5, kind: input, shape index: {}]
  %s6 = inlined_call_operand.vmem [shape: f32[1,8], index: 6, kind: input, shape index: {}]
  %s7 = inlined_call_operand.vmem [shape: f32[1,8], index: 7, kind: input, shape index: {}]
  %s8 = inlined_call_operand.vmem [shape: f32[8,8], index: 8, kind: input, shape index: {}]
  %s9 = inlined_call_operand.vmem [shape: f32[1,8], index: 9, kind: input, shape index: {}]
  %s10 = inlined_call_operand.vmem [shape: f32[1,8], index: 10, kind: input, shape index: {}]
  %s11 = inlined_call_operand.vmem [shape: f32[8,16], index: 11, kind: input, shape index: {}]
  %s12 = inlined_call_operand.vmem [shape: f32[1,16], index: 12, kind: input, shape index: {}]
  %s13 = inlined_call_operand.vmem [shape: f32[1,16], index: 13, kind: input, shape index: {}]
  %s14 = inlined_call_operand.vmem [shape: f32[16,128], index: 14, kind: input, shape index: {}]
  %s15 = inlined_call_operand.vmem [shape: f32[1,128], index: 15, kind: input, shape index: {}]
  %s16 = inlined_call_operand.vmem [shape: f32[1,128], index: 16, kind: input, shape index: {}]
  %s17 = inlined_call_operand.vmem [shape: f32[3,16], index: 17, kind: input, shape index: {}]
  %s18 = inlined_call_operand.vmem [shape: f32[16,3], index: 18, kind: input, shape index: {}]
  %s19 = inlined_call_operand.vmem [shape: f32[2,16,8], index: 19, kind: output, shape index: {0}]
  %s20 = inlined_call_operand.hbm [shape: f32[2,16,128], index: 20, kind: output, shape index: {1}]
  %21 = xla_tuple %s19, %s20
  %s22 = sld [smem:[#allocation0]]
  $region117: #{tpu_custom_call.1} parent=0
    _
  %s24 = ssub.s32 1, %s22
  %s25 = scalar_select 0, %s24, %s22
  $region1: #{tpu_custom_call.1} parent=0
    #allocation2 [shape = 'u8[16384]{0}', space=vmem, size = 0x4000, scoped, tag = 'output window, operand 1']
    #allocation3 [shape = 's32[2]{0}', space=sflag, size = 0x8, scoped, tag = 'scoped memory for tpu_custom_call.1']
    %26 = vsyncpa [#allocation3], 0
    %s27 = scalar_lea.sflag [#allocation3], 1
    %28 = vsyncpa %s27, 0
    loop: start=0, step=1, limit=4
    $region2: #{tpu_custom_call.1} parent=1 // loop_pre_header
      _
    $region3: #{tpu_custom_call.1} parent=1 // loop_header
      %s30 = sphi 0, %s34
      %p31 = scmp.ge.s32.totalorder %s30, 4
      %s40 = sphi 0, %s42
      %s43 = sphi 0, %s40
      %s44 = sphi 0, %s43
      %s60 = sphi 0, %s44
      %s64 = sphi 0, %s64
      %s66 = sphi 0, %s64
      %s67 = sphi 0, %s66
      %s81 = sphi 0, %s67
      %s85 = sphi 0, %s85
      %s87 = sphi 0, %s85
      %s88 = sphi 0, %s87
      %s102 = sphi 0, %s88
      %s106 = sphi 0, %s106
      %s108 = sphi 0, %s106
      %s109 = sphi 0, %s108
      %s123 = sphi 0, %s109
      %s127 = sphi 0, %s127
      %s129 = sphi 0, %s127
      %s130 = sphi 0, %s129
      %s144 = sphi 0, %s130
      %s148 = sphi 0, %s148
      %s150 = sphi 0, %s148
      %s151 = sphi 0, %s150
      %s165 = sphi 0, %s151
      %s169 = sphi 0, %s169
      %s171 = sphi 0, %s169
      %s172 = sphi 0, %s171
      %s186 = sphi 0, %s172
      %s190 = sphi 0, %s190
      %s192 = sphi 0, %s190
      %s193 = sphi 0, %s192
      %s207 = sphi 0, %s193
      %s211 = sphi 0, %s211
      %s213 = sphi 0, %s211
      %s214 = sphi 0, %s213
      %s228 = sphi 0, %s214
      %s232 = sphi 0, %s232
      %s234 = sphi 0, %s232
      %s235 = sphi 0, %s234
      %s249 = sphi 0, %s235
      %s253 = sphi 0, %s253
      %s255 = sphi 0, %s253
      %s256 = sphi 0, %s255
      %s270 = sphi 0, %s256
      %s274 = sphi 0, %s274
      %s276 = sphi 0, %s274
      %s277 = sphi 0, %s276
      %s291 = sphi 0, %s277
      %s295 = sphi 0, %s295
      %s297 = sphi 0, %s295
      %s298 = sphi 0, %s297
      %s312 = sphi 0, %s298
      %s316 = sphi 0, %s316
      %s318 = sphi 0, %s316
      %s319 = sphi 0, %s318
      %s333 = sphi 0, %s319
      %s337 = sphi 0, %s337
      %s339 = sphi 0, %s337
      %s340 = sphi 0, %s339
      %s354 = sphi 0, %s340
      %s358 = sphi 0, %s358
      %s360 = sphi 0, %s358
      %s361 = sphi 0, %s360
      %s375 = sphi 0, %s361
      %s379 = sphi 0, %s379
      %s381 = sphi 0, %s379
      %s382 = sphi 0, %s381
      %s396 = sphi 0, %s382
      %s400 = sphi 0, %s400
      %s402 = sphi 0, %s400
      %s403 = sphi 0, %s402
      %s417 = sphi 0, %s403
      %s421 = sphi 0, %s421
      %s423 = sphi 0, %s421
      %s424 = sphi 0, %s423
      %s438 = sphi 0, %s424
      %s444 = sphi 0, %s446
      %s447 = sphi 0, %s444
      %s448 = sphi 0, %s447
      %s464 = sphi 0, %s448
      %s470 = sphi 0, %s472
      %s473 = sphi 0, %s470
      %s474 = sphi 0, %s473
      %s490 = sphi 0, %s474
    $region4: #{tpu_custom_call.1} parent=1 // loop_header_branch
      %33 = sbr.rel (%p31) target = $region8
    $region5: #{tpu_custom_call.1} parent=1 // loop_body
      %s35 = ssub.s32 %s30, 1
      %s36 = ssub.s32 %s30, 2
      %s37 = sadd.s32 %s30, 1
      %s38 = ssub.s32 %s30, %s37
      %p39 = scmp.eq.s32.totalorder %s38, 0
      %s41 = sadd.s32 %s40, 1
      %s42 = scalar_select %p39, %s40, %s41
      %p45 = pneg %p39
      %p46 = scmp.eq.s32.totalorder %s30, 1
      %p47 = por %p45, %p46
      %p48 = scmp.ne.s32.totalorder %s40, %s43
      %p49 = scmp.eq.s32.totalorder %s30, 0
      %p50 = por %p48, %p49
      %p51 = scmp.ne.s32.totalorder %s40, %s43
      %p52 = scmp.eq.s32.totalorder %s35, 1
      %p53 = por %p51, %p52
      %p54 = scmp.ne.s32.totalorder %s43, %s44
      %p55 = scmp.eq.s32.totalorder %s35, 0
      %p56 = por %p54, %p55
      %p57 = scmp.ne.s32.totalorder %s43, %s44
      %p58 = scmp.eq.s32.totalorder %s36, 1
      %p59 = por %p57, %p58
      %p61 = scmp.ne.s32.totalorder %s44, %s60
      %p62 = scmp.eq.s32.totalorder %s36, 0
      %p63 = por %p61, %p62
      %s65 = sadd.s32 %s64, 1
      %p68 = scmp.eq.s32.totalorder %s30, 1
      %p69 = scmp.ne.s32.totalorder %s64, %s66
      %p70 = scmp.eq.s32.totalorder %s30, 0
      %p71 = por %p69, %p70
      %p72 = scmp.ne.s32.totalorder %s64, %s66
      %p73 = scmp.eq.s32.totalorder %s35, 1
      %p74 = por %p72, %p73
      %p75 = scmp.ne.s32.totalorder %s66, %s67
      %p76 = scmp.eq.s32.totalorder %s35, 0
      %p77 = por %p75, %p76
      %p78 = scmp.ne.s32.totalorder %s66, %s67
      %p79 = scmp.eq.s32.totalorder %s36, 1
      %p80 = por %p78, %p79
      %p82 = scmp.ne.s32.totalorder %s67, %s81
      %p83 = scmp.eq.s32.totalorder %s36, 0
      %p84 = por %p82, %p83
      %s86 = sadd.s32 %s85, 1
      %p89 = scmp.eq.s32.totalorder %s30, 1
      %p90 = scmp.ne.s32.totalorder %s85, %s87
      %p91 = scmp.eq.s32.totalorder %s30, 0
      %p92 = por %p90, %p91
      %p93 = scmp.ne.s32.totalorder %s85, %s87
      %p94 = scmp.eq.s32.totalorder %s35, 1
      %p95 = por %p93, %p94
      %p96 = scmp.ne.s32.totalorder %s87, %s88
      %p97 = scmp.eq.s32.totalorder %s35, 0
      %p98 = por %p96, %p97
      %p99 = scmp.ne.s32.totalorder %s87, %s88
      %p100 = scmp.eq.s32.totalorder %s36, 1
      %p101 = por %p99, %p100
      %p103 = scmp.ne.s32.totalorder %s88, %s102
      %p104 = scmp.eq.s32.totalorder %s36, 0
      %p105 = por %p103, %p104
      %s107 = sadd.s32 %s106, 1
      %p110 = scmp.eq.s32.totalorder %s30, 1
      %p111 = scmp.ne.s32.totalorder %s106, %s108
      %p112 = scmp.eq.s32.totalorder %s30, 0
      %p113 = por %p111, %p112
      %p114 = scmp.ne.s32.totalorder %s106, %s108
      %p115 = scmp.eq.s32.totalorder %s35, 1
      %p116 = por %p114, %p115
      %p117 = scmp.ne.s32.totalorder %s108, %s109
      %p118 = scmp.eq.s32.totalorder %s35, 0
      %p119 = por %p117, %p118
      %p120 = scmp.ne.s32.totalorder %s108, %s109
      %p121 = scmp.eq.s32.totalorder %s36, 1
      %p122 = por %p120, %p121
      %p124 = scmp.ne.s32.totalorder %s109, %s123
      %p125 = scmp.eq.s32.totalorder %s36, 0
      %p126 = por %p124, %p125
      %s128 = sadd.s32 %s127, 1
      %p131 = scmp.eq.s32.totalorder %s30, 1
      %p132 = scmp.ne.s32.totalorder %s127, %s129
      %p133 = scmp.eq.s32.totalorder %s30, 0
      %p134 = por %p132, %p133
      %p135 = scmp.ne.s32.totalorder %s127, %s129
      %p136 = scmp.eq.s32.totalorder %s35, 1
      %p137 = por %p135, %p136
      %p138 = scmp.ne.s32.totalorder %s129, %s130
      %p139 = scmp.eq.s32.totalorder %s35, 0
      %p140 = por %p138, %p139
      %p141 = scmp.ne.s32.totalorder %s129, %s130
      %p142 = scmp.eq.s32.totalorder %s36, 1
      %p143 = por %p141, %p142
      %p145 = scmp.ne.s32.totalorder %s130, %s144
      %p146 = scmp.eq.s32.totalorder %s36, 0
      %p147 = por %p145, %p146
      %s149 = sadd.s32 %s148, 1
      %p152 = scmp.eq.s32.totalorder %s30, 1
      %p153 = scmp.ne.s32.totalorder %s148, %s150
      %p154 = scmp.eq.s32.totalorder %s30, 0
      %p155 = por %p153, %p154
      %p156 = scmp.ne.s32.totalorder %s148, %s150
      %p157 = scmp.eq.s32.totalorder %s35, 1
      %p158 = por %p156, %p157
      %p159 = scmp.ne.s32.totalorder %s150, %s151
      %p160 = scmp.eq.s32.totalorder %s35, 0
      %p161 = por %p159, %p160
      %p162 = scmp.ne.s32.totalorder %s150, %s151
      %p163 = scmp.eq.s32.totalorder %s36, 1
      %p164 = por %p162, %p163
      %p166 = scmp.ne.s32.totalorder %s151, %s165
      %p167 = scmp.eq.s32.totalorder %s36, 0
      %p168 = por %p166, %p167
      %s170 = sadd.s32 %s169, 1
      %p173 = scmp.eq.s32.totalorder %s30, 1
      %p174 = scmp.ne.s32.totalorder %s169, %s171
      %p175 = scmp.eq.s32.totalorder %s30, 0
      %p176 = por %p174, %p175
      %p177 = scmp.ne.s32.totalorder %s169, %s171
      %p178 = scmp.eq.s32.totalorder %s35, 1
      %p179 = por %p177, %p178
      %p180 = scmp.ne.s32.totalorder %s171, %s172
      %p181 = scmp.eq.s32.totalorder %s35, 0
      %p182 = por %p180, %p181
      %p183 = scmp.ne.s32.totalorder %s171, %s172
      %p184 = scmp.eq.s32.totalorder %s36, 1
      %p185 = por %p183, %p184
      %p187 = scmp.ne.s32.totalorder %s172, %s186
      %p188 = scmp.eq.s32.totalorder %s36, 0
      %p189 = por %p187, %p188
      %s191 = sadd.s32 %s190, 1
      %p194 = scmp.eq.s32.totalorder %s30, 1
      %p195 = scmp.ne.s32.totalorder %s190, %s192
      %p196 = scmp.eq.s32.totalorder %s30, 0
      %p197 = por %p195, %p196
      %p198 = scmp.ne.s32.totalorder %s190, %s192
      %p199 = scmp.eq.s32.totalorder %s35, 1
      %p200 = por %p198, %p199
      %p201 = scmp.ne.s32.totalorder %s192, %s193
      %p202 = scmp.eq.s32.totalorder %s35, 0
      %p203 = por %p201, %p202
      %p204 = scmp.ne.s32.totalorder %s192, %s193
      %p205 = scmp.eq.s32.totalorder %s36, 1
      %p206 = por %p204, %p205
      %p208 = scmp.ne.s32.totalorder %s193, %s207
      %p209 = scmp.eq.s32.totalorder %s36, 0
      %p210 = por %p208, %p209
      %s212 = sadd.s32 %s211, 1
      %p215 = scmp.eq.s32.totalorder %s30, 1
      %p216 = scmp.ne.s32.totalorder %s211, %s213
      %p217 = scmp.eq.s32.totalorder %s30, 0
      %p218 = por %p216, %p217
      %p219 = scmp.ne.s32.totalorder %s211, %s213
      %p220 = scmp.eq.s32.totalorder %s35, 1
      %p221 = por %p219, %p220
      %p222 = scmp.ne.s32.totalorder %s213, %s214
      %p223 = scmp.eq.s32.totalorder %s35, 0
      %p224 = por %p222, %p223
      %p225 = scmp.ne.s32.totalorder %s213, %s214
      %p226 = scmp.eq.s32.totalorder %s36, 1
      %p227 = por %p225, %p226
      %p229 = scmp.ne.s32.totalorder %s214, %s228
      %p230 = scmp.eq.s32.totalorder %s36, 0
      %p231 = por %p229, %p230
      %s233 = sadd.s32 %s232, 1
      %p236 = scmp.eq.s32.totalorder %s30, 1
      %p237 = scmp.ne.s32.totalorder %s232, %s234
      %p238 = scmp.eq.s32.totalorder %s30, 0
      %p239 = por %p237, %p238
      %p240 = scmp.ne.s32.totalorder %s232, %s234
      %p241 = scmp.eq.s32.totalorder %s35, 1
      %p242 = por %p240, %p241
      %p243 = scmp.ne.s32.totalorder %s234, %s235
      %p244 = scmp.eq.s32.totalorder %s35, 0
      %p245 = por %p243, %p244
      %p246 = scmp.ne.s32.totalorder %s234, %s235
      %p247 = scmp.eq.s32.totalorder %s36, 1
      %p248 = por %p246, %p247
      %p250 = scmp.ne.s32.totalorder %s235, %s249
      %p251 = scmp.eq.s32.totalorder %s36, 0
      %p252 = por %p250, %p251
      %s254 = sadd.s32 %s253, 1
      %p257 = scmp.eq.s32.totalorder %s30, 1
      %p258 = scmp.ne.s32.totalorder %s253, %s255
      %p259 = scmp.eq.s32.totalorder %s30, 0
      %p260 = por %p258, %p259
      %p261 = scmp.ne.s32.totalorder %s253, %s255
      %p262 = scmp.eq.s32.totalorder %s35, 1
      %p263 = por %p261, %p262
      %p264 = scmp.ne.s32.totalorder %s255, %s256
      %p265 = scmp.eq.s32.totalorder %s35, 0
      %p266 = por %p264, %p265
      %p267 = scmp.ne.s32.totalorder %s255, %s256
      %p268 = scmp.eq.s32.totalorder %s36, 1
      %p269 = por %p267, %p268
      %p271 = scmp.ne.s32.totalorder %s256, %s270
      %p272 = scmp.eq.s32.totalorder %s36, 0
      %p273 = por %p271, %p272
      %s275 = sadd.s32 %s274, 1
      %p278 = scmp.eq.s32.totalorder %s30, 1
      %p279 = scmp.ne.s32.totalorder %s274, %s276
      %p280 = scmp.eq.s32.totalorder %s30, 0
      %p281 = por %p279, %p280
      %p282 = scmp.ne.s32.totalorder %s274, %s276
      %p283 = scmp.eq.s32.totalorder %s35, 1
      %p284 = por %p282, %p283
      %p285 = scmp.ne.s32.totalorder %s276, %s277
      %p286 = scmp.eq.s32.totalorder %s35, 0
      %p287 = por %p285, %p286
      %p288 = scmp.ne.s32.totalorder %s276, %s277
      %p289 = scmp.eq.s32.totalorder %s36, 1
      %p290 = por %p288, %p289
      %p292 = scmp.ne.s32.totalorder %s277, %s291
      %p293 = scmp.eq.s32.totalorder %s36, 0
      %p294 = por %p292, %p293
      %s296 = sadd.s32 %s295, 1
      %p299 = scmp.eq.s32.totalorder %s30, 1
      %p300 = scmp.ne.s32.totalorder %s295, %s297
      %p301 = scmp.eq.s32.totalorder %s30, 0
      %p302 = por %p300, %p301
      %p303 = scmp.ne.s32.totalorder %s295, %s297
      %p304 = scmp.eq.s32.totalorder %s35, 1
      %p305 = por %p303, %p304
      %p306 = scmp.ne.s32.totalorder %s297, %s298
      %p307 = scmp.eq.s32.totalorder %s35, 0
      %p308 = por %p306, %p307
      %p309 = scmp.ne.s32.totalorder %s297, %s298
      %p310 = scmp.eq.s32.totalorder %s36, 1
      %p311 = por %p309, %p310
      %p313 = scmp.ne.s32.totalorder %s298, %s312
      %p314 = scmp.eq.s32.totalorder %s36, 0
      %p315 = por %p313, %p314
      %s317 = sadd.s32 %s316, 1
      %p320 = scmp.eq.s32.totalorder %s30, 1
      %p321 = scmp.ne.s32.totalorder %s316, %s318
      %p322 = scmp.eq.s32.totalorder %s30, 0
      %p323 = por %p321, %p322
      %p324 = scmp.ne.s32.totalorder %s316, %s318
      %p325 = scmp.eq.s32.totalorder %s35, 1
      %p326 = por %p324, %p325
      %p327 = scmp.ne.s32.totalorder %s318, %s319
      %p328 = scmp.eq.s32.totalorder %s35, 0
      %p329 = por %p327, %p328
      %p330 = scmp.ne.s32.totalorder %s318, %s319
      %p331 = scmp.eq.s32.totalorder %s36, 1
      %p332 = por %p330, %p331
      %p334 = scmp.ne.s32.totalorder %s319, %s333
      %p335 = scmp.eq.s32.totalorder %s36, 0
      %p336 = por %p334, %p335
      %s338 = sadd.s32 %s337, 1
      %p341 = scmp.eq.s32.totalorder %s30, 1
      %p342 = scmp.ne.s32.totalorder %s337, %s339
      %p343 = scmp.eq.s32.totalorder %s30, 0
      %p344 = por %p342, %p343
      %p345 = scmp.ne.s32.totalorder %s337, %s339
      %p346 = scmp.eq.s32.totalorder %s35, 1
      %p347 = por %p345, %p346
      %p348 = scmp.ne.s32.totalorder %s339, %s340
      %p349 = scmp.eq.s32.totalorder %s35, 0
      %p350 = por %p348, %p349
      %p351 = scmp.ne.s32.totalorder %s339, %s340
      %p352 = scmp.eq.s32.totalorder %s36, 1
      %p353 = por %p351, %p352
      %p355 = scmp.ne.s32.totalorder %s340, %s354
      %p356 = scmp.eq.s32.totalorder %s36, 0
      %p357 = por %p355, %p356
      %s359 = sadd.s32 %s358, 1
      %p362 = scmp.eq.s32.totalorder %s30, 1
      %p363 = scmp.ne.s32.totalorder %s358, %s360
      %p364 = scmp.eq.s32.totalorder %s30, 0
      %p365 = por %p363, %p364
      %p366 = scmp.ne.s32.totalorder %s358, %s360
      %p367 = scmp.eq.s32.totalorder %s35, 1
      %p368 = por %p366, %p367
      %p369 = scmp.ne.s32.totalorder %s360, %s361
      %p370 = scmp.eq.s32.totalorder %s35, 0
      %p371 = por %p369, %p370
      %p372 = scmp.ne.s32.totalorder %s360, %s361
      %p373 = scmp.eq.s32.totalorder %s36, 1
      %p374 = por %p372, %p373
      %p376 = scmp.ne.s32.totalorder %s361, %s375
      %p377 = scmp.eq.s32.totalorder %s36, 0
      %p378 = por %p376, %p377
      %s380 = sadd.s32 %s379, 1
      %p383 = scmp.eq.s32.totalorder %s30, 1
      %p384 = scmp.ne.s32.totalorder %s379, %s381
      %p385 = scmp.eq.s32.totalorder %s30, 0
      %p386 = por %p384, %p385
      %p387 = scmp.ne.s32.totalorder %s379, %s381
      %p388 = scmp.eq.s32.totalorder %s35, 1
      %p389 = por %p387, %p388
      %p390 = scmp.ne.s32.totalorder %s381, %s382
      %p391 = scmp.eq.s32.totalorder %s35, 0
      %p392 = por %p390, %p391
      %p393 = scmp.ne.s32.totalorder %s381, %s382
      %p394 = scmp.eq.s32.totalorder %s36, 1
      %p395 = por %p393, %p394
      %p397 = scmp.ne.s32.totalorder %s382, %s396
      %p398 = scmp.eq.s32.totalorder %s36, 0
      %p399 = por %p397, %p398
      %s401 = sadd.s32 %s400, 1
      %p404 = scmp.eq.s32.totalorder %s30, 1
      %p405 = scmp.ne.s32.totalorder %s400, %s402
      %p406 = scmp.eq.s32.totalorder %s30, 0
      %p407 = por %p405, %p406
      %p408 = scmp.ne.s32.totalorder %s400, %s402
      %p409 = scmp.eq.s32.totalorder %s35, 1
      %p410 = por %p408, %p409
      %p411 = scmp.ne.s32.totalorder %s402, %s403
      %p412 = scmp.eq.s32.totalorder %s35, 0
      %p413 = por %p411, %p412
      %p414 = scmp.ne.s32.totalorder %s402, %s403
      %p415 = scmp.eq.s32.totalorder %s36, 1
      %p416 = por %p414, %p415
      %p418 = scmp.ne.s32.totalorder %s403, %s417
      %p419 = scmp.eq.s32.totalorder %s36, 0
      %p420 = por %p418, %p419
      %s422 = sadd.s32 %s421, 1
      %p425 = scmp.eq.s32.totalorder %s30, 1
      %p426 = scmp.ne.s32.totalorder %s421, %s423
      %p427 = scmp.eq.s32.totalorder %s30, 0
      %p428 = por %p426, %p427
      %p429 = scmp.ne.s32.totalorder %s421, %s423
      %p430 = scmp.eq.s32.totalorder %s35, 1
      %p431 = por %p429, %p430
      %p432 = scmp.ne.s32.totalorder %s423, %s424
      %p433 = scmp.eq.s32.totalorder %s35, 0
      %p434 = por %p432, %p433
      %p435 = scmp.ne.s32.totalorder %s423, %s424
      %p436 = scmp.eq.s32.totalorder %s36, 1
      %p437 = por %p435, %p436
      %p439 = scmp.ne.s32.totalorder %s424, %s438
      %p440 = scmp.eq.s32.totalorder %s36, 0
      %p441 = por %p439, %p440
      %s442 = ssub.s32 %s30, %s37
      %p443 = scmp.eq.s32.totalorder %s442, 0
      %s445 = sadd.s32 %s444, 1
      %s446 = scalar_select %p443, %s444, %s445
      %p449 = pneg %p443
      %p450 = scmp.eq.s32.totalorder %s30, 1
      %p451 = por %p449, %p450
      %p452 = scmp.ne.s32.totalorder %s444, %s447
      %p453 = scmp.eq.s32.totalorder %s30, 0
      %p454 = por %p452, %p453
      %p455 = scmp.ne.s32.totalorder %s444, %s447
      %p456 = scmp.eq.s32.totalorder %s35, 1
      %p457 = por %p455, %p456
      %p458 = scmp.ne.s32.totalorder %s447, %s448
      %p459 = scmp.eq.s32.totalorder %s35, 0
      %p460 = por %p458, %p459
      %p461 = scmp.ne.s32.totalorder %s447, %s448
      %p462 = scmp.eq.s32.totalorder %s36, 1
      %p463 = por %p461, %p462
      %p465 = scmp.ne.s32.totalorder %s448, %s464
      %p466 = scmp.eq.s32.totalorder %s36, 0
      %p467 = por %p465, %p466
      %s468 = ssub.s32 %s30, %s37
      %p469 = scmp.eq.s32.totalorder %s468, 0
      %s471 = sadd.s32 %s470, 1
      %s472 = scalar_select %p469, %s470, %s471
      %p475 = pneg %p469
      %p476 = scmp.eq.s32.totalorder %s30, 1
      %p477 = por %p475, %p476
      %p478 = scmp.ne.s32.totalorder %s470, %s473
      %p479 = scmp.eq.s32.totalorder %s30, 0
      %p480 = por %p478, %p479
      %p481 = scmp.ne.s32.totalorder %s470, %s473
      %p482 = scmp.eq.s32.totalorder %s35, 1
      %p483 = por %p481, %p482
      %p484 = scmp.ne.s32.totalorder %s473, %s474
      %p485 = scmp.eq.s32.totalorder %s35, 0
      %p486 = por %p484, %p485
      %p487 = scmp.ne.s32.totalorder %s473, %s474
      %p488 = scmp.eq.s32.totalorder %s36, 1
      %p489 = por %p487, %p488
      %p491 = scmp.ne.s32.totalorder %s474, %s490
      %p492 = scmp.eq.s32.totalorder %s36, 0
      %p493 = por %p491, %p492
      %p494 = scmp.le.s32.totalorder 1, %s30
      %p495 = scmp.lt.s32.totalorder %s30, 3
      %p496 = pnand %p494, %p495
      %p497 = pneg %p496
      // Predicated region
      $region9: #{tpu_custom_call.1} parent=5 // pred_check
        _
      $region10: #{tpu_custom_call.1} parent=5 // pred_check_branch
        %499 = sbr.rel (%p496) target = $region12
      $region11: #{tpu_custom_call.1} parent=5 // pred_region
        %s500 = ssub.s32 %s30, 1
        // Predicated region
        $region13: #{tpu_custom_call.1} parent=11 // pred_check
          %p501 = pneg %p77
        $region14: #{tpu_custom_call.1} parent=11 // pred_check_branch
          %503 = sbr.rel (%p501) target = $region16
        $region15: #{tpu_custom_call.1} parent=11 // pred_region
          _
        $region16: #{tpu_custom_call.1} parent=11 // pred_fallthru
          _
        // Predicated region
        $region17: #{tpu_custom_call.1} parent=11 // pred_check
          %p504 = pneg %p98
        $region18: #{tpu_custom_call.1} parent=11 // pred_check_branch
          %506 = sbr.rel (%p504) target = $region20
        $region19: #{tpu_custom_call.1} parent=11 // pred_region
          _
        $region20: #{tpu_custom_call.1} parent=11 // pred_fallthru
          _
        // Predicated region
        $region21: #{tpu_custom_call.1} parent=11 // pred_check
          %p507 = pneg %p119
        $region22: #{tpu_custom_call.1} parent=11 // pred_check_branch
          %509 = sbr.rel (%p507) target = $region24
        $region23: #{tpu_custom_call.1} parent=11 // pred_region
          _
        $region24: #{tpu_custom_call.1} parent=11 // pred_fallthru
          _
        // Predicated region
        $region25: #{tpu_custom_call.1} parent=11 // pred_check
          %p510 = pneg %p140
        $region26: #{tpu_custom_call.1} parent=11 // pred_check_branch
          %512 = sbr.rel (%p510) target = $region28
        $region27: #{tpu_custom_call.1} parent=11 // pred_region
          _
        $region28: #{tpu_custom_call.1} parent=11 // pred_fallthru
          _
        // Predicated region
        $region29: #{tpu_custom_call.1} parent=11 // pred_check
          %p513 = pneg %p161
        $region30: #{tpu_custom_call.1} parent=11 // pred_check_branch
          %515 = sbr.rel (%p513) target = $region32
        $region31: #{tpu_custom_call.1} parent=11 // pred_region
          _
        $region32: #{tpu_custom_call.1} parent=11 // pred_fallthru
          _
        // Predicated region
        $region33: #{tpu_custom_call.1} parent=11 // pred_check
          %p516 = pneg %p182
        $region34: #{tpu_custom_call.1} parent=11 // pred_check_branch
          %518 = sbr.rel (%p516) target = $region36
        $region35: #{tpu_custom_call.1} parent=11 // pred_region
          _
        $region36: #{tpu_custom_call.1} parent=11 // pred_fallthru
          _
        // Predicated region
        $region37: #{tpu_custom_call.1} parent=11 // pred_check
          %p519 = pneg %p203
        $region38: #{tpu_custom_call.1} parent=11 // pred_check_branch
          %521 = sbr.rel (%p519) target = $region40
        $region39: #{tpu_custom_call.1} parent=11 // pred_region
          _
        $region40: #{tpu_custom_call.1} parent=11 // pred_fallthru
          _
        // Predicated region
        $region41: #{tpu_custom_call.1} parent=11 // pred_check
          %p522 = pneg %p224
        $region42: #{tpu_custom_call.1} parent=11 // pred_check_branch
          %524 = sbr.rel (%p522) target = $region44
        $region43: #{tpu_custom_call.1} parent=11 // pred_region
          _
        $region44: #{tpu_custom_call.1} parent=11 // pred_fallthru
          _
        // Predicated region
        $region45: #{tpu_custom_call.1} parent=11 // pred_check
          %p525 = pneg %p245
        $region46: #{tpu_custom_call.1} parent=11 // pred_check_branch
          %527 = sbr.rel (%p525) target = $region48
        $region47: #{tpu_custom_call.1} parent=11 // pred_region
          _
        $region48: #{tpu_custom_call.1} parent=11 // pred_fallthru
          _
        // Predicated region
        $region49: #{tpu_custom_call.1} parent=11 // pred_check
          %p528 = pneg %p266
        $region50: #{tpu_custom_call.1} parent=11 // pred_check_branch
          %530 = sbr.rel (%p528) target = $region52
        $region51: #{tpu_custom_call.1} parent=11 // pred_region
          _
        $region52: #{tpu_custom_call.1} parent=11 // pred_fallthru
          _
        // Predicated region
        $region53: #{tpu_custom_call.1} parent=11 // pred_check
          %p531 = pneg %p287
        $region54: #{tpu_custom_call.1} parent=11 // pred_check_branch
          %533 = sbr.rel (%p531) target = $region56
        $region55: #{tpu_custom_call.1} parent=11 // pred_region
          _
        $region56: #{tpu_custom_call.1} parent=11 // pred_fallthru
          _
        // Predicated region
        $region57: #{tpu_custom_call.1} parent=11 // pred_check
          %p534 = pneg %p308
        $region58: #{tpu_custom_call.1} parent=11 // pred_check_branch
          %536 = sbr.rel (%p534) target = $region60
        $region59: #{tpu_custom_call.1} parent=11 // pred_region
          _
        $region60: #{tpu_custom_call.1} parent=11 // pred_fallthru
          _
        // Predicated region
        $region61: #{tpu_custom_call.1} parent=11 // pred_check
          %p537 = pneg %p329
        $region62: #{tpu_custom_call.1} parent=11 // pred_check_branch
          %539 = sbr.rel (%p537) target = $region64
        $region63: #{tpu_custom_call.1} parent=11 // pred_region
          _
        $region64: #{tpu_custom_call.1} parent=11 // pred_fallthru
          _
        // Predicated region
        $region65: #{tpu_custom_call.1} parent=11 // pred_check
          %p540 = pneg %p350
        $region66: #{tpu_custom_call.1} parent=11 // pred_check_branch
          %542 = sbr.rel (%p540) target = $region68
        $region67: #{tpu_custom_call.1} parent=11 // pred_region
          _
        $region68: #{tpu_custom_call.1} parent=11 // pred_fallthru
          _
        // Predicated region
        $region69: #{tpu_custom_call.1} parent=11 // pred_check
          %p543 = pneg %p371
        $region70: #{tpu_custom_call.1} parent=11 // pred_check_branch
          %545 = sbr.rel (%p543) target = $region72
        $region71: #{tpu_custom_call.1} parent=11 // pred_region
          _
        $region72: #{tpu_custom_call.1} parent=11 // pred_fallthru
          _
        // Predicated region
        $region73: #{tpu_custom_call.1} parent=11 // pred_check
          %p546 = pneg %p392
        $region74: #{tpu_custom_call.1} parent=11 // pred_check_branch
          %548 = sbr.rel (%p546) target = $region76
        $region75: #{tpu_custom_call.1} parent=11 // pred_region
          _
        $region76: #{tpu_custom_call.1} parent=11 // pred_fallthru
          _
        // Predicated region
        $region77: #{tpu_custom_call.1} parent=11 // pred_check
          %p549 = pneg %p413
        $region78: #{tpu_custom_call.1} parent=11 // pred_check_branch
          %551 = sbr.rel (%p549) target = $region80
        $region79: #{tpu_custom_call.1} parent=11 // pred_region
          _
        $region80: #{tpu_custom_call.1} parent=11 // pred_fallthru
          _
        // Predicated region
        $region81: #{tpu_custom_call.1} parent=11 // pred_check
          %p552 = pneg %p434
        $region82: #{tpu_custom_call.1} parent=11 // pred_check_branch
          %554 = sbr.rel (%p552) target = $region84
        $region83: #{tpu_custom_call.1} parent=11 // pred_region
          _
        $region84: #{tpu_custom_call.1} parent=11 // pred_fallthru
          _
      $region12: #{tpu_custom_call.1} parent=5 // pred_fallthru
        _
      %p555 = scmp.lt.s32.totalorder %s30, 2
      // Predicated region
      $region85: #{tpu_custom_call.1} parent=5 // pred_check
        %p556 = pneg %p555
      $region86: #{tpu_custom_call.1} parent=5 // pred_check_branch
        %558 = sbr.rel (%p556) target = $region88
      $region87: #{tpu_custom_call.1} parent=5 // pred_region
        // Predicated region
        $region89: #{tpu_custom_call.1} parent=87 // pred_check
          %p559 = pneg %p50
        $region90: #{tpu_custom_call.1} parent=87 // pred_check_branch
          %561 = sbr.rel (%p559) target = $region92
        $region91: #{tpu_custom_call.1} parent=87 // pred_region
          %p562 = scmp.lt.s32.totalorder %s30, 1
          %s563 = scalar_select %p562, %s30, 1
          %s564 = smul.addr %s563, 2
          %s565 = smul.addr %s564, 8
          %s566 = scalar_lea.vmem %s0, %s565
        $region92: #{tpu_custom_call.1} parent=87 // pred_fallthru
          _
      $region88: #{tpu_custom_call.1} parent=5 // pred_fallthru
        _
      %p567 = scmp.le.s32.totalorder 1, %s30
      %p568 = scmp.lt.s32.totalorder %s30, 3
      %p569 = pnand %p567, %p568
      %p570 = pneg %p569
      // Predicated region
      $region93: #{tpu_custom_call.1} parent=5 // pred_check
        _
      $region94: #{tpu_custom_call.1} parent=5 // pred_check_branch
        %572 = sbr.rel (%p569) target = $region96
      $region95: #{tpu_custom_call.1} parent=5 // pred_region
        %s573 = ssub.s32 %s30, 1
        %p574 = scmp.lt.s32.totalorder %s35, 1
        %s575 = scalar_select %p574, %s35, 1
        %s576 = smul.addr %s575, 2
        %s577 = smul.addr %s576, 8
        %s578 = scalar_lea.vmem %s0, %s577
        %p579 = pneg %p56
        %p580 = pneg %p53
        %p581 = pneg %p77
        %p582 = pneg %p74
        %p583 = pneg %p98
        %p584 = pneg %p95
        %p585 = pneg %p119
        %p586 = pneg %p116
        %p587 = pneg %p140
        %p588 = pneg %p137
        %p589 = pneg %p161
        %p590 = pneg %p158
        %p591 = pneg %p182
        %p592 = pneg %p179
        %p593 = pneg %p203
        %p594 = pneg %p200
        %p595 = pneg %p224
        %p596 = pneg %p221
        %p597 = pneg %p245
        %p598 = pneg %p242
        %p599 = pneg %p266
        %p600 = pneg %p263
        %p601 = pneg %p287
        %p602 = pneg %p284
        %p603 = pneg %p308
        %p604 = pneg %p305
        %p605 = pneg %p329
        %p606 = pneg %p326
        %p607 = pneg %p350
        %p608 = pneg %p347
        %p609 = pneg %p371
        %p610 = pneg %p368
        %p611 = pneg %p392
        %p612 = pneg %p389
        %p613 = pneg %p413
        %p614 = pneg %p410
        %p615 = pneg %p434
        %p616 = pneg %p431
        %p617 = pneg %p460
        %p618 = pneg %p457
        %p619 = scmp.lt.s32.totalorder %s35, 1
        %s620 = scalar_select %p619, %s35, 1
        %s621 = smul.addr %s620, 2
        %s622 = smul.addr %s621, 8
        %s623 = scalar_lea.vmem %s19, %s622
        %p624 = pneg %p486
        %p625 = pneg %p483
        %s626 = sand.u32 %s473, 1
        %s627 = scalar_lea.sflag [#allocation3], %s626
        %s628 = sand.u32 %s473, 1
        %s629 = smul.addr %s628, 16
        %s630 = scalar_lea.vmem [#allocation2], %s629
        %p631 = scmp.lt.s32.totalorder %s35, 1
        %s632 = scalar_select %p631, %s35, 1
        %s633 = smul.addr %s632, 2
        %s634 = smul.addr %s633, 8
        %s635 = scalar_lea.vmem %s0, %s634
        %p636 = scmp.lt.s32.totalorder %s35, 1
        %s637 = scalar_select %p636, %s35, 1
        %s638 = smul.addr %s637, 2
        %s639 = smul.addr %s638, 8
        %s640 = scalar_lea.vmem %s19, %s639
        %v641 = vld [vmem:[%s635] sm:$0xff]
        %v642 = vld [vmem:[%s635 + $0x8] sm:$0xff]
        %v643 = vld [vmem:[%s1] sm:$0x7]
        %vm644 = vcmask 23552
        %v646 = vsel %vm644, %v641, 0
        %v649 = vsel %vm644, %v642, 0
        %vm651 = vcmask 1042432
        %v653 = vsel %vm651, %v643, 0
        %655 = vmatprep.subr.mxu0 0.0
        %656 = vmatpush1.msra.mxu0 0.0
        %657 = vmatprep.subr.mxu0 0.0
        %658 = vmatpush1.msra.mxu0 0.0
        %659 = vmatprep.subr.mxu0 0.0
        %660 = vmatpush1.msra.mxu0 0.0
        %661 = vmatprep.subr.mxu0 0.0
        %662 = vmatpush1.msra.mxu0 0.0
        %663 = vmatprep.subr.mxu0 0.0
        %664 = vmatpush1.msra.mxu0 0.0
        %665 = vmatprep.subr.mxu0 0.0
        %666 = vmatpush1.msra.mxu0 0.0
        %667 = vmatprep.subr.mxu0 0.0
        %668 = vmatpush1.msra.mxu0 0.0
        %669 = vmatprep.subr.mxu0 0.0
        %670 = vmatpush1.msra.mxu0 0.0
        %671 = vmatprep.subr.mxu0 0.0
        %672 = vmatpush1.msra.mxu0 0.0
        %673 = vmatprep.subr.mxu0 0.0
        %674 = vmatpush1.msra.mxu0 0.0
        %675 = vmatprep.subr.mxu0 0.0
        %676 = vmatpush1.msra.mxu0 0.0
        %677 = vmatprep.subr.mxu0 0.0
        %678 = vmatpush1.msra.mxu0 0.0
        %679 = vmatprep.subr.mxu0 0.0
        %680 = vmatpush1.msra.mxu0 0.0
        %681 = vmatprep.subr.mxu0 0.0
        %682 = vmatpush1.msra.mxu0 0.0
        %683 = vmatprep.subr.mxu0 0.0
        %684 = vmatpush1.msra.mxu0 0.0
        %685 = vmatprep.subr.mxu0 0.0
        %686 = vmatpush1.msra.mxu0 %v653
        %687 = vmatprep.subr.mxu0 0.0
        %688 = vmatpush2.msra.mxu0 0.0
        %689 = vmatprep.subr.mxu0 0.0
        %690 = vmatpush2.msra.mxu0 0.0
        %691 = vmatprep.subr.mxu0 0.0
        %692 = vmatpush2.msra.mxu0 0.0
        %693 = vmatprep.subr.mxu0 0.0
        %694 = vmatpush2.msra.mxu0 0.0
        %695 = vmatprep.subr.mxu0 0.0
        %696 = vmatpush2.msra.mxu0 0.0
        %697 = vmatprep.subr.mxu0 0.0
        %698 = vmatpush2.msra.mxu0 0.0
        %699 = vmatprep.subr.mxu0 0.0
        %700 = vmatpush2.msra.mxu0 0.0
        %701 = vmatprep.subr.mxu0 0.0
        %702 = vmatpush2.msra.mxu0 0.0
        %703 = vmatprep.subr.mxu0 0.0
        %704 = vmatpush2.msra.mxu0 0.0
        %705 = vmatprep.subr.mxu0 0.0
        %706 = vmatpush2.msra.mxu0 0.0
        %707 = vmatprep.subr.mxu0 0.0
        %708 = vmatpush2.msra.mxu0 0.0
        %709 = vmatprep.subr.mxu0 0.0
        %710 = vmatpush2.msra.mxu0 0.0
        %711 = vmatprep.subr.mxu0 0.0
        %712 = vmatpush2.msra.mxu0 0.0
        %713 = vmatprep.subr.mxu0 0.0
        %714 = vmatpush2.msra.mxu0 0.0
        %715 = vmatprep.subr.mxu0 0.0
        %716 = vmatpush2.msra.mxu0 0.0
        %717 = vmatprep.subr.mxu0 0.0
        %718 = vmatpush2.msra.mxu0 0.0
        %719 = vmatprep.mubr.f32.mxu0 0.0
        %720 = vmatmul.mubr.f32.gmra.mxu0 %v646
        %v721 = vpop.f32.mrf.mxu0
        %v722 = vadd.f32 0.0, %v721
        %v723 = vpop.f32.mrf.mxu0
        %724 = vmatprep.mubr.f32.mxu0 0.0
        %725 = vmatmul.mubr.f32.gmra.mxu0 %v649
        %v726 = vpop.f32.mrf.mxu0
        %v727 = vadd.f32 0.0, %v726
        %v728 = vpop.f32.mrf.mxu0
        %729 = vdwg.mxu0
        %v730 = vld [vmem:[%s2] sm:$0x1]
        %v731 = vld [vmem:[%s3] sm:$0x1]
        %vm732 = vcmask 64512
        %v733 = vsel %vm732, %v722, 0.0
        %v734 = vsel %vm732, %v727, 0.0
        %v735 = vadd.f32 %v733, %v734
        %v736 = vrot.slane %v735, 4
        %v737 = vadd.f32 %v735, %v736
        %v738 = vrot.slane %v737, 2
        %v739 = vadd.f32 %v737, %v738
        %v740 = vrot.slane %v739, 1
        %v741 = vadd.f32 %v739, %v740
        %v742 = vrcp.pop 16.0
        %v743 = vmul.f32 %v741, %v742
        %v744 = vmul.f32 %v722, %v722
        %v745 = vmul.f32 %v727, %v727
        %v746 = vsel %vm732, %v744, 0.0
        %v747 = vsel %vm732, %v745, 0.0
        %v748 = vadd.f32 %v746, %v747
        %v749 = vrot.slane %v748, 4
        %v750 = vadd.f32 %v748, %v749
        %v751 = vrot.slane %v750, 2
        %v752 = vadd.f32 %v750, %v751
        %v753 = vrot.slane %v752, 1
        %v754 = vadd.f32 %v752, %v753
        %v755 = vmul.f32 %v754, %v742
        %v756 = vmul.f32 %v743, %v743
        %v757 = vsub.f32 %v755, %v756
        %v758 = vmax.f32 %v757, 0.0
        %v759 = vsub.f32 %v722, %v743
        %v760 = vsub.f32 %v727, %v743
        %v761 = vadd.f32 %v758, 1e-05
        %v762 = vrsqrt.pop %v761
        %v763 = vmul.f32 %v759, %v762
        %v764 = vmul.f32 %v760, %v762
        %v766 = vlaneseq
        %v767 = vshrl.u32 %v766, 7
        %v768 = vsub.s32 0, %v767
        %v769 = vrot.slane %v730, %v768
        %v771 = vmul.f32 %v763, %v769
        %v772 = vmul.f32 %v764, %v769
        %v774 = vlaneseq
        %v775 = vshrl.u32 %v774, 7
        %v776 = vsub.s32 0, %v775
        %v777 = vrot.slane %v731, %v776
        %v779 = vadd.f32 %v771, %v777
        %v780 = vadd.f32 %v772, %v777
        %v781 = vmax.f32 %v779, 0.0
        %v782 = vmax.f32 %v780, 0.0
        %v783 = vld [vmem:[%s4] sm:$0xff]
        %v785 = vsel %vm732, %v781, 0
        %v788 = vsel %vm732, %v782, 0
        %790 = vmatprep.subr.mxu0 0.0
        %791 = vmatpush1.msra.mxu0 0.0
        %792 = vmatprep.subr.mxu0 0.0
        %793 = vmatpush1.msra.mxu0 0.0
        %794 = vmatprep.subr.mxu0 0.0
        %795 = vmatpush1.msra.mxu0 0.0
        %796 = vmatprep.subr.mxu0 0.0
        %797 = vmatpush1.msra.mxu0 0.0
        %798 = vmatprep.subr.mxu0 0.0
        %799 = vmatpush1.msra.mxu0 0.0
        %800 = vmatprep.subr.mxu0 0.0
        %801 = vmatpush1.msra.mxu0 0.0
        %802 = vmatprep.subr.mxu0 0.0
        %803 = vmatpush1.msra.mxu0 0.0
        %804 = vmatprep.subr.mxu0 0.0
        %805 = vmatpush1.msra.mxu0 0.0
        %806 = vmatprep.subr.mxu0 0.0
        %807 = vmatpush1.msra.mxu0 0.0
        %808 = vmatprep.subr.mxu0 0.0
        %809 = vmatpush1.msra.mxu0 0.0
        %810 = vmatprep.subr.mxu0 0.0
        %811 = vmatpush1.msra.mxu0 0.0
        %812 = vmatprep.subr.mxu0 0.0
        %813 = vmatpush1.msra.mxu0 0.0
        %814 = vmatprep.subr.mxu0 0.0
        %815 = vmatpush1.msra.mxu0 0.0
        %816 = vmatprep.subr.mxu0 0.0
        %817 = vmatpush1.msra.mxu0 0.0
        %818 = vmatprep.subr.mxu0 0.0
        %819 = vmatpush1.msra.mxu0 0.0
        %820 = vmatprep.subr.mxu0 0.0
        %821 = vmatpush1.msra.mxu0 %v783
        %822 = vmatprep.subr.mxu0 0.0
        %823 = vmatpush2.msra.mxu0 0.0
        %824 = vmatprep.subr.mxu0 0.0
        %825 = vmatpush2.msra.mxu0 0.0
        %826 = vmatprep.subr.mxu0 0.0
        %827 = vmatpush2.msra.mxu0 0.0
        %828 = vmatprep.subr.mxu0 0.0
        %829 = vmatpush2.msra.mxu0 0.0
        %830 = vmatprep.subr.mxu0 0.0
        %831 = vmatpush2.msra.mxu0 0.0
        %832 = vmatprep.subr.mxu0 0.0
        %833 = vmatpush2.msra.mxu0 0.0
        %834 = vmatprep.subr.mxu0 0.0
        %835 = vmatpush2.msra.mxu0 0.0
        %836 = vmatprep.subr.mxu0 0.0
        %837 = vmatpush2.msra.mxu0 0.0
        %838 = vmatprep.subr.mxu0 0.0
        %839 = vmatpush2.msra.mxu0 0.0
        %840 = vmatprep.subr.mxu0 0.0
        %841 = vmatpush2.msra.mxu0 0.0
        %842 = vmatprep.subr.mxu0 0.0
        %843 = vmatpush2.msra.mxu0 0.0
        %844 = vmatprep.subr.mxu0 0.0
        %845 = vmatpush2.msra.mxu0 0.0
        %846 = vmatprep.subr.mxu0 0.0
        %847 = vmatpush2.msra.mxu0 0.0
        %848 = vmatprep.subr.mxu0 0.0
        %849 = vmatpush2.msra.mxu0 0.0
        %850 = vmatprep.subr.mxu0 0.0
        %851 = vmatpush2.msra.mxu0 0.0
        %852 = vmatprep.subr.mxu0 0.0
        %853 = vmatpush2.msra.mxu0 0.0
        %854 = vmatprep.mubr.f32.mxu0 0.0
        %855 = vmatmul.mubr.f32.gmra.mxu0 %v785
        %v856 = vpop.f32.mrf.mxu0
        %v857 = vadd.f32 0.0, %v856
        %v858 = vpop.f32.mrf.mxu0
        %859 = vmatprep.mubr.f32.mxu0 0.0
        %860 = vmatmul.mubr.f32.gmra.mxu0 %v788
        %v861 = vpop.f32.mrf.mxu0
        %v862 = vadd.f32 0.0, %v861
        %v863 = vpop.f32.mrf.mxu0
        %864 = vdwg.mxu0
        %865 = vst.msk [vmem:[%s640] sm:$0xff] %vm732, %v857
        %866 = vst.msk [vmem:[%s640 + $0x8] sm:$0xff] %vm732, %v862
        %v867 = vld [vmem:[%s5] sm:$0xff]
        %v869 = vsel %vm732, %v857, 0
        %v872 = vsel %vm732, %v862, 0
        %874 = vmatprep.subr.mxu0 0.0
        %875 = vmatpush1.msra.mxu0 0.0
        %876 = vmatprep.subr.mxu0 0.0
        %877 = vmatpush1.msra.mxu0 0.0
        %878 = vmatprep.subr.mxu0 0.0
        %879 = vmatpush1.msra.mxu0 0.0
        %880 = vmatprep.subr.mxu0 0.0
        %881 = vmatpush1.msra.mxu0 0.0
        %882 = vmatprep.subr.mxu0 0.0
        %883 = vmatpush1.msra.mxu0 0.0
        %884 = vmatprep.subr.mxu0 0.0
        %885 = vmatpush1.msra.mxu0 0.0
        %886 = vmatprep.subr.mxu0 0.0
        %887 = vmatpush1.msra.mxu0 0.0
        %888 = vmatprep.subr.mxu0 0.0
        %889 = vmatpush1.msra.mxu0 0.0
        %890 = vmatprep.subr.mxu0 0.0
        %891 = vmatpush1.msra.mxu0 0.0
        %892 = vmatprep.subr.mxu0 0.0
        %893 = vmatpush1.msra.mxu0 0.0
        %894 = vmatprep.subr.mxu0 0.0
        %895 = vmatpush1.msra.mxu0 0.0
        %896 = vmatprep.subr.mxu0 0.0
        %897 = vmatpush1.msra.mxu0 0.0
        %898 = vmatprep.subr.mxu0 0.0
        %899 = vmatpush1.msra.mxu0 0.0
        %900 = vmatprep.subr.mxu0 0.0
        %901 = vmatpush1.msra.mxu0 0.0
        %902 = vmatprep.subr.mxu0 0.0
        %903 = vmatpush1.msra.mxu0 0.0
        %904 = vmatprep.subr.mxu0 0.0
        %905 = vmatpush1.msra.mxu0 %v867
        %906 = vmatprep.subr.mxu0 0.0
        %907 = vmatpush2.msra.mxu0 0.0
        %908 = vmatprep.subr.mxu0 0.0
        %909 = vmatpush2.msra.mxu0 0.0
        %910 = vmatprep.subr.mxu0 0.0
        %911 = vmatpush2.msra.mxu0 0.0
        %912 = vmatprep.subr.mxu0 0.0
        %913 = vmatpush2.msra.mxu0 0.0
        %914 = vmatprep.subr.mxu0 0.0
        %915 = vmatpush2.msra.mxu0 0.0
        %916 = vmatprep.subr.mxu0 0.0
        %917 = vmatpush2.msra.mxu0 0.0
        %918 = vmatprep.subr.mxu0 0.0
        %919 = vmatpush2.msra.mxu0 0.0
        %920 = vmatprep.subr.mxu0 0.0
        %921 = vmatpush2.msra.mxu0 0.0
        %922 = vmatprep.subr.mxu0 0.0
        %923 = vmatpush2.msra.mxu0 0.0
        %924 = vmatprep.subr.mxu0 0.0
        %925 = vmatpush2.msra.mxu0 0.0
        %926 = vmatprep.subr.mxu0 0.0
        %927 = vmatpush2.msra.mxu0 0.0
        %928 = vmatprep.subr.mxu0 0.0
        %929 = vmatpush2.msra.mxu0 0.0
        %930 = vmatprep.subr.mxu0 0.0
        %931 = vmatpush2.msra.mxu0 0.0
        %932 = vmatprep.subr.mxu0 0.0
        %933 = vmatpush2.msra.mxu0 0.0
        %934 = vmatprep.subr.mxu0 0.0
        %935 = vmatpush2.msra.mxu0 0.0
        %936 = vmatprep.subr.mxu0 0.0
        %937 = vmatpush2.msra.mxu0 0.0
        %938 = vmatprep.mubr.f32.mxu0 0.0
        %939 = vmatmul.mubr.f32.gmra.mxu0 %v869
        %v940 = vpop.f32.mrf.mxu0
        %v941 = vadd.f32 0.0, %v940
        %v942 = vpop.f32.mrf.mxu0
        %943 = vmatprep.mubr.f32.mxu0 0.0
        %944 = vmatmul.mubr.f32.gmra.mxu0 %v872
        %v945 = vpop.f32.mrf.mxu0
        %v946 = vadd.f32 0.0, %v945
        %v947 = vpop.f32.mrf.mxu0
        %948 = vdwg.mxu0
        %v949 = vld [vmem:[%s6] sm:$0x1]
        %v950 = vld [vmem:[%s7] sm:$0x1]
        %v951 = vsel %vm732, %v941, 0.0
        %v952 = vsel %vm732, %v946, 0.0
        %v953 = vadd.f32 %v951, %v952
        %v954 = vrot.slane %v953, 4
        %v955 = vadd.f32 %v953, %v954
        %v956 = vrot.slane %v955, 2
        %v957 = vadd.f32 %v955, %v956
        %v958 = vrot.slane %v957, 1
        %v959 = vadd.f32 %v957, %v958
        %v960 = vmul.f32 %v959, %v742
        %v961 = vmul.f32 %v941, %v941
        %v962 = vmul.f32 %v946, %v946
        %v963 = vsel %vm732, %v961, 0.0
        %v964 = vsel %vm732, %v962, 0.0
        %v965 = vadd.f32 %v963, %v964
        %v966 = vrot.slane %v965, 4
        %v967 = vadd.f32 %v965, %v966
        %v968 = vrot.slane %v967, 2
        %v969 = vadd.f32 %v967, %v968
        %v970 = vrot.slane %v969, 1
        %v971 = vadd.f32 %v969, %v970
        %v972 = vmul.f32 %v971, %v742
        %v973 = vmul.f32 %v960, %v960
        %v974 = vsub.f32 %v972, %v973
        %v975 = vmax.f32 %v974, 0.0
        %v976 = vsub.f32 %v941, %v960
        %v977 = vsub.f32 %v946, %v960
        %v978 = vadd.f32 %v975, 1e-05
        %v979 = vrsqrt.pop %v978
        %v980 = vmul.f32 %v976, %v979
        %v981 = vmul.f32 %v977, %v979
        %v983 = vlaneseq
        %v984 = vshrl.u32 %v983, 7
        %v985 = vsub.s32 0, %v984
        %v986 = vrot.slane %v949, %v985
        %v988 = vmul.f32 %v980, %v986
        %v989 = vmul.f32 %v981, %v986
        %v991 = vlaneseq
        %v992 = vshrl.u32 %v991, 7
        %v993 = vsub.s32 0, %v992
        %v994 = vrot.slane %v950, %v993
        %v996 = vadd.f32 %v988, %v994
        %v997 = vadd.f32 %v989, %v994
        %v998 = vmax.f32 %v996, 0.0
        %v999 = vmax.f32 %v997, 0.0
        %v1000 = vld [vmem:[%s8] sm:$0xff]
        %v1002 = vsel %vm732, %v998, 0
        %v1005 = vsel %vm732, %v999, 0
        %1007 = vmatprep.subr.mxu0 0.0
        %1008 = vmatpush1.msra.mxu0 0.0
        %1009 = vmatprep.subr.mxu0 0.0
        %1010 = vmatpush1.msra.mxu0 0.0
        %1011 = vmatprep.subr.mxu0 0.0
        %1012 = vmatpush1.msra.mxu0 0.0
        %1013 = vmatprep.subr.mxu0 0.0
        %1014 = vmatpush1.msra.mxu0 0.0
        %1015 = vmatprep.subr.mxu0 0.0
        %1016 = vmatpush1.msra.mxu0 0.0
        %1017 = vmatprep.subr.mxu0 0.0
        %1018 = vmatpush1.msra.mxu0 0.0
        %1019 = vmatprep.subr.mxu0 0.0
        %1020 = vmatpush1.msra.mxu0 0.0
        %1021 = vmatprep.subr.mxu0 0.0
        %1022 = vmatpush1.msra.mxu0 0.0
        %1023 = vmatprep.subr.mxu0 0.0
        %1024 = vmatpush1.msra.mxu0 0.0
        %1025 = vmatprep.subr.mxu0 0.0
        %1026 = vmatpush1.msra.mxu0 0.0
        %1027 = vmatprep.subr.mxu0 0.0
        %1028 = vmatpush1.msra.mxu0 0.0
        %1029 = vmatprep.subr.mxu0 0.0
        %1030 = vmatpush1.msra.mxu0 0.0
        %1031 = vmatprep.subr.mxu0 0.0
        %1032 = vmatpush1.msra.mxu0 0.0
        %1033 = vmatprep.subr.mxu0 0.0
        %1034 = vmatpush1.msra.mxu0 0.0
        %1035 = vmatprep.subr.mxu0 0.0
        %1036 = vmatpush1.msra.mxu0 0.0
        %1037 = vmatprep.subr.mxu0 0.0
        %1038 = vmatpush1.msra.mxu0 %v1000
        %1039 = vmatprep.subr.mxu0 0.0
        %1040 = vmatpush2.msra.mxu0 0.0
        %1041 = vmatprep.subr.mxu0 0.0
        %1042 = vmatpush2.msra.mxu0 0.0
        %1043 = vmatprep.subr.mxu0 0.0
        %1044 = vmatpush2.msra.mxu0 0.0
        %1045 = vmatprep.subr.mxu0 0.0
        %1046 = vmatpush2.msra.mxu0 0.0
        %1047 = vmatprep.subr.mxu0 0.0
        %1048 = vmatpush2.msra.mxu0 0.0
        %1049 = vmatprep.subr.mxu0 0.0
        %1050 = vmatpush2.msra.mxu0 0.0
        %1051 = vmatprep.subr.mxu0 0.0
        %1052 = vmatpush2.msra.mxu0 0.0
        %1053 = vmatprep.subr.mxu0 0.0
        %1054 = vmatpush2.msra.mxu0 0.0
        %1055 = vmatprep.subr.mxu0 0.0
        %1056 = vmatpush2.msra.mxu0 0.0
        %1057 = vmatprep.subr.mxu0 0.0
        %1058 = vmatpush2.msra.mxu0 0.0
        %1059 = vmatprep.subr.mxu0 0.0
        %1060 = vmatpush2.msra.mxu0 0.0
        %1061 = vmatprep.subr.mxu0 0.0
        %1062 = vmatpush2.msra.mxu0 0.0
        %1063 = vmatprep.subr.mxu0 0.0
        %1064 = vmatpush2.msra.mxu0 0.0
        %1065 = vmatprep.subr.mxu0 0.0
        %1066 = vmatpush2.msra.mxu0 0.0
        %1067 = vmatprep.subr.mxu0 0.0
        %1068 = vmatpush2.msra.mxu0 0.0
        %1069 = vmatprep.subr.mxu0 0.0
        %1070 = vmatpush2.msra.mxu0 0.0
        %1071 = vmatprep.mubr.f32.mxu0 0.0
        %1072 = vmatmul.mubr.f32.gmra.mxu0 %v1002
        %v1073 = vpop.f32.mrf.mxu0
        %v1074 = vadd.f32 0.0, %v1073
        %v1075 = vpop.f32.mrf.mxu0
        %1076 = vmatprep.mubr.f32.mxu0 0.0
        %1077 = vmatmul.mubr.f32.gmra.mxu0 %v1005
        %v1078 = vpop.f32.mrf.mxu0
        %v1079 = vadd.f32 0.0, %v1078
        %v1080 = vpop.f32.mrf.mxu0
        %1081 = vdwg.mxu0
        %v1082 = vld [vmem:[%s9] sm:$0x1]
        %v1083 = vld [vmem:[%s10] sm:$0x1]
        %v1084 = vsel %vm732, %v1074, 0.0
        %v1085 = vsel %vm732, %v1079, 0.0
        %v1086 = vadd.f32 %v1084, %v1085
        %v1087 = vrot.slane %v1086, 4
        %v1088 = vadd.f32 %v1086, %v1087
        %v1089 = vrot.slane %v1088, 2
        %v1090 = vadd.f32 %v1088, %v1089
        %v1091 = vrot.slane %v1090, 1
        %v1092 = vadd.f32 %v1090, %v1091
        %v1093 = vmul.f32 %v1092, %v742
        %v1094 = vmul.f32 %v1074, %v1074
        %v1095 = vmul.f32 %v1079, %v1079
        %v1096 = vsel %vm732, %v1094, 0.0
        %v1097 = vsel %vm732, %v1095, 0.0
        %v1098 = vadd.f32 %v1096, %v1097
        %v1099 = vrot.slane %v1098, 4
        %v1100 = vadd.f32 %v1098, %v1099
        %v1101 = vrot.slane %v1100, 2
        %v1102 = vadd.f32 %v1100, %v1101
        %v1103 = vrot.slane %v1102, 1
        %v1104 = vadd.f32 %v1102, %v1103
        %v1105 = vmul.f32 %v1104, %v742
        %v1106 = vmul.f32 %v1093, %v1093
        %v1107 = vsub.f32 %v1105, %v1106
        %v1108 = vmax.f32 %v1107, 0.0
        %v1109 = vsub.f32 %v1074, %v1093
        %v1110 = vsub.f32 %v1079, %v1093
        %v1111 = vadd.f32 %v1108, 1e-05
        %v1112 = vrsqrt.pop %v1111
        %v1113 = vmul.f32 %v1109, %v1112
        %v1114 = vmul.f32 %v1110, %v1112
        %v1116 = vlaneseq
        %v1117 = vshrl.u32 %v1116, 7
        %v1118 = vsub.s32 0, %v1117
        %v1119 = vrot.slane %v1082, %v1118
        %v1121 = vmul.f32 %v1113, %v1119
        %v1122 = vmul.f32 %v1114, %v1119
        %v1124 = vlaneseq
        %v1125 = vshrl.u32 %v1124, 7
        %v1126 = vsub.s32 0, %v1125
        %v1127 = vrot.slane %v1083, %v1126
        %v1129 = vadd.f32 %v1121, %v1127
        %v1130 = vadd.f32 %v1122, %v1127
        %v1131 = vmax.f32 %v1129, 0.0
        %v1132 = vmax.f32 %v1130, 0.0
        %v1133 = vld [vmem:[%s11] sm:$0xff]
        %v1135 = vsel %vm732, %v1131, 0
        %v1138 = vsel %vm732, %v1132, 0
        %1140 = vmatprep.subr.mxu0 0.0
        %1141 = vmatpush1.msra.mxu0 0.0
        %1142 = vmatprep.subr.mxu0 0.0
        %1143 = vmatpush1.msra.mxu0 0.0
        %1144 = vmatprep.subr.mxu0 0.0
        %1145 = vmatpush1.msra.mxu0 0.0
        %1146 = vmatprep.subr.mxu0 0.0
        %1147 = vmatpush1.msra.mxu0 0.0
        %1148 = vmatprep.subr.mxu0 0.0
        %1149 = vmatpush1.msra.mxu0 0.0
        %1150 = vmatprep.subr.mxu0 0.0
        %1151 = vmatpush1.msra.mxu0 0.0
        %1152 = vmatprep.subr.mxu0 0.0
        %1153 = vmatpush1.msra.mxu0 0.0
        %1154 = vmatprep.subr.mxu0 0.0
        %1155 = vmatpush1.msra.mxu0 0.0
        %1156 = vmatprep.subr.mxu0 0.0
        %1157 = vmatpush1.msra.mxu0 0.0
        %1158 = vmatprep.subr.mxu0 0.0
        %1159 = vmatpush1.msra.mxu0 0.0
        %1160 = vmatprep.subr.mxu0 0.0
        %1161 = vmatpush1.msra.mxu0 0.0
        %1162 = vmatprep.subr.mxu0 0.0
        %1163 = vmatpush1.msra.mxu0 0.0
        %1164 = vmatprep.subr.mxu0 0.0
        %1165 = vmatpush1.msra.mxu0 0.0
        %1166 = vmatprep.subr.mxu0 0.0
        %1167 = vmatpush1.msra.mxu0 0.0
        %1168 = vmatprep.subr.mxu0 0.0
        %1169 = vmatpush1.msra.mxu0 0.0
        %1170 = vmatprep.subr.mxu0 0.0
        %1171 = vmatpush1.msra.mxu0 %v1133
        %1172 = vmatprep.subr.mxu0 0.0
        %1173 = vmatpush2.msra.mxu0 0.0
        %1174 = vmatprep.subr.mxu0 0.0
        %1175 = vmatpush2.msra.mxu0 0.0
        %1176 = vmatprep.subr.mxu0 0.0
        %1177 = vmatpush2.msra.mxu0 0.0
        %1178 = vmatprep.subr.mxu0 0.0
        %1179 = vmatpush2.msra.mxu0 0.0
        %1180 = vmatprep.subr.mxu0 0.0
        %1181 = vmatpush2.msra.mxu0 0.0
        %1182 = vmatprep.subr.mxu0 0.0
        %1183 = vmatpush2.msra.mxu0 0.0
        %1184 = vmatprep.subr.mxu0 0.0
        %1185 = vmatpush2.msra.mxu0 0.0
        %1186 = vmatprep.subr.mxu0 0.0
        %1187 = vmatpush2.msra.mxu0 0.0
        %1188 = vmatprep.subr.mxu0 0.0
        %1189 = vmatpush2.msra.mxu0 0.0
        %1190 = vmatprep.subr.mxu0 0.0
        %1191 = vmatpush2.msra.mxu0 0.0
        %1192 = vmatprep.subr.mxu0 0.0
        %1193 = vmatpush2.msra.mxu0 0.0
        %1194 = vmatprep.subr.mxu0 0.0
        %1195 = vmatpush2.msra.mxu0 0.0
        %1196 = vmatprep.subr.mxu0 0.0
        %1197 = vmatpush2.msra.mxu0 0.0
        %1198 = vmatprep.subr.mxu0 0.0
        %1199 = vmatpush2.msra.mxu0 0.0
        %1200 = vmatprep.subr.mxu0 0.0
        %1201 = vmatpush2.msra.mxu0 0.0
        %1202 = vmatprep.subr.mxu0 0.0
        %1203 = vmatpush2.msra.mxu0 0.0
        %1204 = vmatprep.mubr.f32.mxu0 0.0
        %1205 = vmatmul.mubr.f32.gmra.mxu0 %v1135
        %v1206 = vpop.f32.mrf.mxu0
        %v1207 = vadd.f32 0.0, %v1206
        %v1208 = vpop.f32.mrf.mxu0
        %1209 = vmatprep.mubr.f32.mxu0 0.0
        %1210 = vmatmul.mubr.f32.gmra.mxu0 %v1138
        %v1211 = vpop.f32.mrf.mxu0
        %v1212 = vadd.f32 0.0, %v1211
        %v1213 = vpop.f32.mrf.mxu0
        %1214 = vdwg.mxu0
        %v1215 = vld [vmem:[%s12] sm:$0x1]
        %v1216 = vld [vmem:[%s13] sm:$0x1]
        %vm1217 = vcmask 130048
        %v1218 = vsel %vm1217, %v1207, 0.0
        %v1219 = vsel %vm1217, %v1212, 0.0
        %v1220 = vadd.f32 %v1218, %v1219
        %v1221 = vrot.slane %v1220, 4
        %v1222 = vadd.f32 %v1220, %v1221
        %v1223 = vrot.slane %v1222, 2
        %v1224 = vadd.f32 %v1222, %v1223
        %v1225 = vrot.slane %v1224, 1
        %v1226 = vadd.f32 %v1224, %v1225
        %v1227 = vmul.f32 %v1226, %v742
        %v1228 = vmul.f32 %v1207, %v1207
        %v1229 = vmul.f32 %v1212, %v1212
        %v1230 = vsel %vm1217, %v1228, 0.0
        %v1231 = vsel %vm1217, %v1229, 0.0
        %v1232 = vadd.f32 %v1230, %v1231
        %v1233 = vrot.slane %v1232, 4
        %v1234 = vadd.f32 %v1232, %v1233
        %v1235 = vrot.slane %v1234, 2
        %v1236 = vadd.f32 %v1234, %v1235
        %v1237 = vrot.slane %v1236, 1
        %v1238 = vadd.f32 %v1236, %v1237
        %v1239 = vmul.f32 %v1238, %v742
        %v1240 = vmul.f32 %v1227, %v1227
        %v1241 = vsub.f32 %v1239, %v1240
        %v1242 = vmax.f32 %v1241, 0.0
        %v1243 = vsub.f32 %v1207, %v1227
        %v1244 = vsub.f32 %v1212, %v1227
        %v1245 = vadd.f32 %v1242, 1e-05
        %v1246 = vrsqrt.pop %v1245
        %v1247 = vmul.f32 %v1243, %v1246
        %v1248 = vmul.f32 %v1244, %v1246
        %v1250 = vlaneseq
        %v1251 = vshrl.u32 %v1250, 7
        %v1252 = vsub.s32 0, %v1251
        %v1253 = vrot.slane %v1215, %v1252
        %v1255 = vmul.f32 %v1247, %v1253
        %v1256 = vmul.f32 %v1248, %v1253
        %v1258 = vlaneseq
        %v1259 = vshrl.u32 %v1258, 7
        %v1260 = vsub.s32 0, %v1259
        %v1261 = vrot.slane %v1216, %v1260
        %v1263 = vadd.f32 %v1255, %v1261
        %v1264 = vadd.f32 %v1256, %v1261
        %v1265 = vmax.f32 %v1263, 0.0
        %v1266 = vmax.f32 %v1264, 0.0
        %v1267 = vld [vmem:[%s14] sm:$0xff]
        %v1268 = vld [vmem:[%s14 + $0x8] sm:$0xff]
        %v1270 = vsel %vm1217, %v1265, 0
        %v1273 = vsel %vm1217, %v1266, 0
        %1275 = vmatprep.subr.mxu0 0.0
        %1276 = vmatpush1.msra.mxu0 0.0
        %1277 = vmatprep.subr.mxu0 0.0
        %1278 = vmatpush1.msra.mxu0 0.0
        %1279 = vmatprep.subr.mxu0 0.0
        %1280 = vmatpush1.msra.mxu0 0.0
        %1281 = vmatprep.subr.mxu0 0.0
        %1282 = vmatpush1.msra.mxu0 0.0
        %1283 = vmatprep.subr.mxu0 0.0
        %1284 = vmatpush1.msra.mxu0 0.0
        %1285 = vmatprep.subr.mxu0 0.0
        %1286 = vmatpush1.msra.mxu0 0.0
        %1287 = vmatprep.subr.mxu0 0.0
        %1288 = vmatpush1.msra.mxu0 0.0
        %1289 = vmatprep.subr.mxu0 0.0
        %1290 = vmatpush1.msra.mxu0 0.0
        %1291 = vmatprep.subr.mxu0 0.0
        %1292 = vmatpush1.msra.mxu0 0.0
        %1293 = vmatprep.subr.mxu0 0.0
        %1294 = vmatpush1.msra.mxu0 0.0
        %1295 = vmatprep.subr.mxu0 0.0
        %1296 = vmatpush1.msra.mxu0 0.0
        %1297 = vmatprep.subr.mxu0 0.0
        %1298 = vmatpush1.msra.mxu0 0.0
        %1299 = vmatprep.subr.mxu0 0.0
        %1300 = vmatpush1.msra.mxu0 0.0
        %1301 = vmatprep.subr.mxu0 0.0
        %1302 = vmatpush1.msra.mxu0 0.0
        %1303 = vmatprep.subr.mxu0 0.0
        %1304 = vmatpush1.msra.mxu0 %v1268
        %1305 = vmatprep.subr.mxu0 0.0
        %1306 = vmatpush1.msra.mxu0 %v1267
        %1307 = vmatprep.subr.mxu0 0.0
        %1308 = vmatpush2.msra.mxu0 0.0
        %1309 = vmatprep.subr.mxu0 0.0
        %1310 = vmatpush2.msra.mxu0 0.0
        %1311 = vmatprep.subr.mxu0 0.0
        %1312 = vmatpush2.msra.mxu0 0.0
        %1313 = vmatprep.subr.mxu0 0.0
        %1314 = vmatpush2.msra.mxu0 0.0
        %1315 = vmatprep.subr.mxu0 0.0
        %1316 = vmatpush2.msra.mxu0 0.0
        %1317 = vmatprep.subr.mxu0 0.0
        %1318 = vmatpush2.msra.mxu0 0.0
        %1319 = vmatprep.subr.mxu0 0.0
        %1320 = vmatpush2.msra.mxu0 0.0
        %1321 = vmatprep.subr.mxu0 0.0
        %1322 = vmatpush2.msra.mxu0 0.0
        %1323 = vmatprep.subr.mxu0 0.0
        %1324 = vmatpush2.msra.mxu0 0.0
        %1325 = vmatprep.subr.mxu0 0.0
        %1326 = vmatpush2.msra.mxu0 0.0
        %1327 = vmatprep.subr.mxu0 0.0
        %1328 = vmatpush2.msra.mxu0 0.0
        %1329 = vmatprep.subr.mxu0 0.0
        %1330 = vmatpush2.msra.mxu0 0.0
        %1331 = vmatprep.subr.mxu0 0.0
        %1332 = vmatpush2.msra.mxu0 0.0
        %1333 = vmatprep.subr.mxu0 0.0
        %1334 = vmatpush2.msra.mxu0 0.0
        %1335 = vmatprep.subr.mxu0 0.0
        %1336 = vmatpush2.msra.mxu0 0.0
        %1337 = vmatprep.subr.mxu0 0.0
        %1338 = vmatpush2.msra.mxu0 0.0
        %1339 = vmatprep.mubr.f32.mxu0 0.0
        %1340 = vmatmul.mubr.f32.gmra.mxu0 %v1270
        %v1341 = vpop.f32.mrf.mxu0
        %v1342 = vadd.f32 0.0, %v1341
        %v1343 = vpop.f32.mrf.mxu0
        %1344 = vmatprep.mubr.f32.mxu0 0.0
        %1345 = vmatmul.mubr.f32.gmra.mxu0 %v1273
        %v1346 = vpop.f32.mrf.mxu0
        %v1347 = vadd.f32 0.0, %v1346
        %v1348 = vpop.f32.mrf.mxu0
        %1349 = vdwg.mxu0
        %v1350 = vld [vmem:[%s15] sm:$0x1]
        %v1351 = vld [vmem:[%s16] sm:$0x1]
        %v1352 = vadd.f32 %v1342, %v1347
        %v1353 = vrot.slane %v1352, 4
        %v1354 = vadd.f32 %v1352, %v1353
        %v1355 = vrot.slane %v1354, 2
        %v1356 = vadd.f32 %v1354, %v1355
        %v1357 = vrot.slane %v1356, 1
        %v1358 = vadd.f32 %v1356, %v1357
        %v1359 = vmul.f32 %v1358, %v742
        %v1360 = vmul.f32 %v1342, %v1342
        %v1361 = vmul.f32 %v1347, %v1347
        %v1362 = vadd.f32 %v1360, %v1361
        %v1363 = vrot.slane %v1362, 4
        %v1364 = vadd.f32 %v1362, %v1363
        %v1365 = vrot.slane %v1364, 2
        %v1366 = vadd.f32 %v1364, %v1365
        %v1367 = vrot.slane %v1366, 1
        %v1368 = vadd.f32 %v1366, %v1367
        %v1369 = vmul.f32 %v1368, %v742
        %v1370 = vmul.f32 %v1359, %v1359
        %v1371 = vsub.f32 %v1369, %v1370
        %v1372 = vmax.f32 %v1371, 0.0
        %v1373 = vsub.f32 %v1342, %v1359
        %v1374 = vsub.f32 %v1347, %v1359
        %v1375 = vadd.f32 %v1372, 1e-05
        %v1376 = vrsqrt.pop %v1375
        %v1377 = vmul.f32 %v1373, %v1376
        %v1378 = vmul.f32 %v1374, %v1376
        %v1380 = vlaneseq
        %v1381 = vshrl.u32 %v1380, 7
        %v1382 = vsub.s32 0, %v1381
        %v1383 = vrot.slane %v1350, %v1382
        %v1385 = vmul.f32 %v1377, %v1383
        %v1386 = vmul.f32 %v1378, %v1383
        %v1388 = vlaneseq
        %v1389 = vshrl.u32 %v1388, 7
        %v1390 = vsub.s32 0, %v1389
        %v1391 = vrot.slane %v1351, %v1390
        %v1393 = vadd.f32 %v1385, %v1391
        %v1394 = vadd.f32 %v1386, %v1391
        %v1395 = vmax.f32 %v1393, 0.0
        %v1396 = vmax.f32 %v1394, 0.0
        %v1397 = vld [vmem:[%s17] sm:$0x7]
        %v1399 = vsel %vm1217, %v1397, 0
        %1401 = vmatprep.subr.mxu0 0.0
        %1402 = vmatpush1.msra.mxu0 0.0
        %1403 = vmatprep.subr.mxu0 0.0
        %1404 = vmatpush1.msra.mxu0 0.0
        %1405 = vmatprep.subr.mxu0 0.0
        %1406 = vmatpush1.msra.mxu0 0.0
        %1407 = vmatprep.subr.mxu0 0.0
        %1408 = vmatpush1.msra.mxu0 0.0
        %1409 = vmatprep.subr.mxu0 0.0
        %1410 = vmatpush1.msra.mxu0 0.0
        %1411 = vmatprep.subr.mxu0 0.0
        %1412 = vmatpush1.msra.mxu0 0.0
        %1413 = vmatprep.subr.mxu0 0.0
        %1414 = vmatpush1.msra.mxu0 0.0
        %1415 = vmatprep.subr.mxu0 0.0
        %1416 = vmatpush1.msra.mxu0 0.0
        %1417 = vmatprep.subr.mxu0 0.0
        %1418 = vmatpush1.msra.mxu0 0.0
        %1419 = vmatprep.subr.mxu0 0.0
        %1420 = vmatpush1.msra.mxu0 0.0
        %1421 = vmatprep.subr.mxu0 0.0
        %1422 = vmatpush1.msra.mxu0 0.0
        %1423 = vmatprep.subr.mxu0 0.0
        %1424 = vmatpush1.msra.mxu0 0.0
        %1425 = vmatprep.subr.mxu0 0.0
        %1426 = vmatpush1.msra.mxu0 0.0
        %1427 = vmatprep.subr.mxu0 0.0
        %1428 = vmatpush1.msra.mxu0 0.0
        %1429 = vmatprep.subr.mxu0 0.0
        %1430 = vmatpush1.msra.mxu0 %v1396
        %1431 = vmatprep.subr.mxu0 0.0
        %1432 = vmatpush1.msra.mxu0 %v1395
        %1433 = vmatprep.subr.mxu0 0.0
        %1434 = vmatpush2.msra.mxu0 0.0
        %1435 = vmatprep.subr.mxu0 0.0
        %1436 = vmatpush2.msra.mxu0 0.0
        %1437 = vmatprep.subr.mxu0 0.0
        %1438 = vmatpush2.msra.mxu0 0.0
        %1439 = vmatprep.subr.mxu0 0.0
        %1440 = vmatpush2.msra.mxu0 0.0
        %1441 = vmatprep.subr.mxu0 0.0
        %1442 = vmatpush2.msra.mxu0 0.0
        %1443 = vmatprep.subr.mxu0 0.0
        %1444 = vmatpush2.msra.mxu0 0.0
        %1445 = vmatprep.subr.mxu0 0.0
        %1446 = vmatpush2.msra.mxu0 0.0
        %1447 = vmatprep.subr.mxu0 0.0
        %1448 = vmatpush2.msra.mxu0 0.0
        %1449 = vmatprep.subr.mxu0 0.0
        %1450 = vmatpush2.msra.mxu0 0.0
        %1451 = vmatprep.subr.mxu0 0.0
        %1452 = vmatpush2.msra.mxu0 0.0
        %1453 = vmatprep.subr.mxu0 0.0
        %1454 = vmatpush2.msra.mxu0 0.0
        %1455 = vmatprep.subr.mxu0 0.0
        %1456 = vmatpush2.msra.mxu0 0.0
        %1457 = vmatprep.subr.mxu0 0.0
        %1458 = vmatpush2.msra.mxu0 0.0
        %1459 = vmatprep.subr.mxu0 0.0
        %1460 = vmatpush2.msra.mxu0 0.0
        %1461 = vmatprep.subr.mxu0 0.0
        %1462 = vmatpush2.msra.mxu0 0.0
        %1463 = vmatprep.subr.mxu0 0.0
        %1464 = vmatpush2.msra.mxu0 0.0
        %1465 = vmatprep.mubr.f32.mxu0 0.0
        %1466 = vmatmul.mubr.f32.gmra.mxu0 %v1399
        %v1467 = vpop.f32.mrf.mxu0
        %v1468 = vadd.f32 0.0, %v1467
        %v1469 = vpop.f32.mrf.mxu0
        %1470 = vdwg.mxu0
        %v1471 = vld [vmem:[%s18] sm:$0xff]
        %v1472 = vld [vmem:[%s18 + $0x8] sm:$0xff]
        %v1474 = vsel %vm644, %v1471, 0
        %v1477 = vsel %vm644, %v1472, 0
        %v1480 = vsel %vm651, %v1468, 0
        %1482 = vmatprep.subr.mxu0 0.0
        %1483 = vmatpush1.msra.mxu0 0.0
        %1484 = vmatprep.subr.mxu0 0.0
        %1485 = vmatpush1.msra.mxu0 0.0
        %1486 = vmatprep.subr.mxu0 0.0
        %1487 = vmatpush1.msra.mxu0 0.0
        %1488 = vmatprep.subr.mxu0 0.0
        %1489 = vmatpush1.msra.mxu0 0.0
        %1490 = vmatprep.subr.mxu0 0.0
        %1491 = vmatpush1.msra.mxu0 0.0
        %1492 = vmatprep.subr.mxu0 0.0
        %1493 = vmatpush1.msra.mxu0 0.0
        %1494 = vmatprep.subr.mxu0 0.0
        %1495 = vmatpush1.msra.mxu0 0.0
        %1496 = vmatprep.subr.mxu0 0.0
        %1497 = vmatpush1.msra.mxu0 0.0
        %1498 = vmatprep.subr.mxu0 0.0
        %1499 = vmatpush1.msra.mxu0 0.0
        %1500 = vmatprep.subr.mxu0 0.0
        %1501 = vmatpush1.msra.mxu0 0.0
        %1502 = vmatprep.subr.mxu0 0.0
        %1503 = vmatpush1.msra.mxu0 0.0
        %1504 = vmatprep.subr.mxu0 0.0
        %1505 = vmatpush1.msra.mxu0 0.0
        %1506 = vmatprep.subr.mxu0 0.0
        %1507 = vmatpush1.msra.mxu0 0.0
        %1508 = vmatprep.subr.mxu0 0.0
        %1509 = vmatpush1.msra.mxu0 0.0
        %1510 = vmatprep.subr.mxu0 0.0
        %1511 = vmatpush1.msra.mxu0 0.0
        %1512 = vmatprep.subr.mxu0 0.0
        %1513 = vmatpush1.msra.mxu0 %v1480
        %1514 = vmatprep.subr.mxu0 0.0
        %1515 = vmatpush2.msra.mxu0 0.0
        %1516 = vmatprep.subr.mxu0 0.0
        %1517 = vmatpush2.msra.mxu0 0.0
        %1518 = vmatprep.subr.mxu0 0.0
        %1519 = vmatpush2.msra.mxu0 0.0
        %1520 = vmatprep.subr.mxu0 0.0
        %1521 = vmatpush2.msra.mxu0 0.0
        %1522 = vmatprep.subr.mxu0 0.0
        %1523 = vmatpush2.msra.mxu0 0.0
        %1524 = vmatprep.subr.mxu0 0.0
        %1525 = vmatpush2.msra.mxu0 0.0
        %1526 = vmatprep.subr.mxu0 0.0
        %1527 = vmatpush2.msra.mxu0 0.0
        %1528 = vmatprep.subr.mxu0 0.0
        %1529 = vmatpush2.msra.mxu0 0.0
        %1530 = vmatprep.subr.mxu0 0.0
        %1531 = vmatpush2.msra.mxu0 0.0
        %1532 = vmatprep.subr.mxu0 0.0
        %1533 = vmatpush2.msra.mxu0 0.0
        %1534 = vmatprep.subr.mxu0 0.0
        %1535 = vmatpush2.msra.mxu0 0.0
        %1536 = vmatprep.subr.mxu0 0.0
        %1537 = vmatpush2.msra.mxu0 0.0
        %1538 = vmatprep.subr.mxu0 0.0
        %1539 = vmatpush2.msra.mxu0 0.0
        %1540 = vmatprep.subr.mxu0 0.0
        %1541 = vmatpush2.msra.mxu0 0.0
        %1542 = vmatprep.subr.mxu0 0.0
        %1543 = vmatpush2.msra.mxu0 0.0
        %1544 = vmatprep.subr.mxu0 0.0
        %1545 = vmatpush2.msra.mxu0 0.0
        %1546 = vmatprep.mubr.f32.mxu0 0.0
        %1547 = vmatmul.mubr.f32.gmra.mxu0 %v1474
        %v1548 = vpop.f32.mrf.mxu0
        %v1549 = vadd.f32 0.0, %v1548
        %v1550 = vpop.f32.mrf.mxu0
        %1551 = vmatprep.mubr.f32.mxu0 0.0
        %1552 = vmatmul.mubr.f32.gmra.mxu0 %v1477
        %v1553 = vpop.f32.mrf.mxu0
        %v1554 = vadd.f32 0.0, %v1553
        %v1555 = vpop.f32.mrf.mxu0
        %1556 = vdwg.mxu0
        %1557 = vst [vmem:[%s630] sm:$0xff] %v1549
        %1558 = vst [vmem:[%s630 + $0x8] sm:$0xff] %v1554
        %p1559 = scmp.lt.s32.totalorder %s35, 1
        %s1560 = scalar_select %p1559, %s35, 1
        %s1561 = smul.addr %s1560, 2
        %s1562 = smul.addr %s1561, 8
        %s1563 = scalar_lea.vmem %s19, %s1562
        %s1564 = sand.u32 %s473, 1
        %s1565 = scalar_lea.sflag [#allocation3], %s1564
        %s1566 = sand.u32 %s473, 1
        %s1567 = smul.addr %s1566, 16
        %s1568 = scalar_lea.vmem [#allocation2], %s1567
        // Predicated region
        $region97: #{tpu_custom_call.1} parent=95 // pred_check
          %p1569 = pneg %p457
        $region98: #{tpu_custom_call.1} parent=95 // pred_check_branch
          %1571 = sbr.rel (%p1569) target = $region100
        $region99: #{tpu_custom_call.1} parent=95 // pred_region
          _
        $region100: #{tpu_custom_call.1} parent=95 // pred_fallthru
          _
        // Predicated region
        $region101: #{tpu_custom_call.1} parent=95 // pred_check
          %p1572 = pneg %p483
        $region102: #{tpu_custom_call.1} parent=95 // pred_check_branch
          %1574 = sbr.rel (%p1572) target = $region104
        $region103: #{tpu_custom_call.1} parent=95 // pred_region
          %s1576 = ssub.s32 256, 256
          %1577 = vsyncadd %s1565, %s1576
          %s1578 = smul.addr %s35, 2
          %s1579 = smul.addr %s1578, 128
          %s1580 = scalar_lea.hbm %s20, %s1579
          %s1581 = sshll.u32 %s1568, 4
          %s1582 = int_to_ptr.vmem [resolvable:$true] %s1581
          %1587 = dma.vmem_to_hbm [thread:$0]  %s1582, 256, %s1580, %s1565, 128, 128, 8
        $region104: #{tpu_custom_call.1} parent=95 // pred_fallthru
          _
      $region96: #{tpu_custom_call.1} parent=5 // pred_fallthru
        _
      %p1588 = scmp.le.s32.totalorder 2, %s30
      // Predicated region
      $region105: #{tpu_custom_call.1} parent=5 // pred_check
        %p1589 = pneg %p1588
      $region106: #{tpu_custom_call.1} parent=5 // pred_check_branch
        %1591 = sbr.rel (%p1589) target = $region108
      $region107: #{tpu_custom_call.1} parent=5 // pred_region
        %s1592 = ssub.s32 %s30, 2
        // Predicated region
        $region109: #{tpu_custom_call.1} parent=107 // pred_check
          %p1593 = pneg %p463
        $region110: #{tpu_custom_call.1} parent=107 // pred_check_branch
          %1595 = sbr.rel (%p1593) target = $region112
        $region111: #{tpu_custom_call.1} parent=107 // pred_region
          %p1596 = scmp.lt.s32.totalorder %s36, 1
          %s1597 = scalar_select %p1596, %s36, 1
          %s1598 = smul.addr %s1597, 2
          %s1599 = smul.addr %s1598, 8
          %s1600 = scalar_lea.vmem %s19, %s1599
        $region112: #{tpu_custom_call.1} parent=107 // pred_fallthru
          _
        // Predicated region
        $region113: #{tpu_custom_call.1} parent=107 // pred_check
          %p1601 = pneg %p489
        $region114: #{tpu_custom_call.1} parent=107 // pred_check_branch
          %1603 = sbr.rel (%p1601) target = $region116
        $region115: #{tpu_custom_call.1} parent=107 // pred_region
          %s1604 = sand.u32 %s474, 1
          %s1605 = scalar_lea.sflag [#allocation3], %s1604
          %s1606 = sand.u32 %s474, 1
          %s1607 = smul.addr %s1606, 16
          %s1608 = scalar_lea.vmem [#allocation2], %s1607
          %1609 = dma.done %s1605, 256
        $region116: #{tpu_custom_call.1} parent=107 // pred_fallthru
          _
      $region108: #{tpu_custom_call.1} parent=5 // pred_fallthru
        _
    $region6: #{tpu_custom_call.1} parent=1 // loop_footer
      %s34 = sadd.s32 1, %s30
    $region7: #{tpu_custom_call.1} parent=1 // loop_footer_branch
      %29 = sbr.rel target = $region3
    $region8: #{tpu_custom_call.1} parent=1 // loop_exit
      _
    %1610 = vsyncpa [#allocation3], 1
    %s1611 = scalar_lea.sflag [#allocation3], 1
    %1612 = vsyncpa %s1611, 1

</llo_original>
